<compile_context>
chip_gen: v6e
topology: v6e:2x2x1
jax: 0.10.0
libtpu: 0.0.40
codegen_flags: <defaults>
</compile_context>

<pallas_src>
import math

import jax
import jax.numpy as jnp
import numpy as np
from jax import lax
from jax.experimental import pallas as pl
from jax.experimental.pallas import tpu as pltpu

# --- small problem sizes consistent with the module ---
B = 2           # batch
S = 8           # sequence length
H = 32          # hidden_size
NH = 4          # num_attention_heads
HD = H // NH    # attention_head_size
BS = B * S
LN_EPS = 1e-12  # BERT default layer_norm_eps


# ---------------------------------------------------------------------------
# Fused kernel (one grid step = one batch element):
#   QKV -> attention -> merge heads -> output dense -> residual -> LayerNorm
# ---------------------------------------------------------------------------
def make_fused_kernel(output_attentions: bool):
    def kernel(x_ref, wqkv_ref, wo_ref, pp_ref, mask_ref, *rest):
        if output_attentions:
            out_ref, probs_ref = rest
        else:
            (out_ref,) = rest
            probs_ref = None

        x = x_ref[...]                                   # (S, H) rows of this batch
        pp = pp_ref[...]                                 # (6, H) packed small params
        # One wide MXU push: fused Q|K|V projection. 1/sqrt(HD) is folded into the
        # Q columns of wqkv and into pp[0] at parameter-prep time.
        qkv = jnp.dot(x, wqkv_ref[...], preferred_element_type=jnp.float32)  # (S, 3H)
        q = qkv[:, 0:H] + pp[0:1, :]
        k = qkv[:, H:2 * H] + pp[1:2, :]
        v = qkv[:, 2 * H:3 * H] + pp[2:3, :]

        # Hoist the mask broadcast out of the head loop (one broadcast per batch).
        mask_b = jnp.broadcast_to(mask_ref[0], (S, S))   # (S, S)

        ctx_parts = []
        probs_parts = []
        for h in range(NH):                              # fully unrolled, NH = 4
            c0 = h * HD
            qh = q[:, c0:c0 + HD]                        # (S, HD) pre-scaled
            kh = k[:, c0:c0 + HD]
            vh = v[:, c0:c0 + HD]
            # q @ k^T without an explicit transpose: contract last dims on the MXU.
            scores = lax.dot_general(
                qh, kh, (((1,), (1,)), ((), ())),
                preferred_element_type=jnp.float32) + mask_b
            s_max = jnp.max(scores, axis=-1, keepdims=True)
            e = jnp.exp(scores - s_max)
            denom = jnp.sum(e, axis=-1, keepdims=True)
            # Exact reciprocal: stored probs sum to 1 (they are a user-visible output).
            probs = e * pl.reciprocal(denom, approx=False)
            if probs_ref is not None:
                probs_parts.append(probs)
            ctx_parts.append(jnp.dot(probs, vh, preferred_element_type=jnp.float32))

        # Merge heads in registers: lane-dense (S, H) value, no scratch round-trip.
        ctx = jnp.concatenate(ctx_parts, axis=-1)        # (S, H)

        # BertSelfOutput: dense -> (+ residual) -> LayerNorm (dropout = identity, eval)
        proj = jnp.dot(ctx, wo_ref[...], preferred_element_type=jnp.float32) + pp[3:4, :]
        y = proj + x
        mean = jnp.mean(y, axis=-1, keepdims=True)
        cen = y - mean
        var = jnp.mean(cen * cen, axis=-1, keepdims=True)
        out_ref[...] = cen * lax.rsqrt(var + LN_EPS) * pp[4:5, :] + pp[5:6, :]

        if probs_ref is not None:
            # Single store of all heads' probabilities for this batch element.
            probs_ref[0] = jnp.stack(probs_parts, axis=0)        # (NH, S, S)

    return kernel


# ---------------------------------------------------------------------------
# One-time parameter preparation (done at load time, NOT per forward call).
# ---------------------------------------------------------------------------
def prepare_params(params):
    wq, bq, wk, bk, wv, bv, wo, bo, gamma, beta = params
    scale = 1.0 / math.sqrt(HD)
    # Fused (H, 3H) QKV weight with 1/sqrt(HD) folded into the Q projection.
    wqkv = jnp.concatenate([wq.T * scale, wk.T, wv.T], axis=1)        # (H, 3H)
    wo_t = wo.T                                                       # (H, H)
    # Pack all small per-channel params into one (6, H) array -> single DMA.
    pp = jnp.stack([bq * scale, bk, bv, bo, gamma, beta], axis=0)     # (6, H)
    return wqkv, wo_t, pp


# ---------------------------------------------------------------------------
# Wrapper
# ---------------------------------------------------------------------------
def bert_attention(hidden_states, attention_mask, prepared, output_attentions=True):
    wqkv, wo_t, pp = prepared
    x2d = hidden_states.reshape(BS, H)
    # Assumes standard BERT additive mask (B, 1, 1, S): 0 valid / -10000 padding.
    mask3d = attention_mask.reshape(B, 1, S)

    in_specs = [
        pl.BlockSpec((S, H), lambda b: (b, 0)),            # x rows of batch b
        pl.BlockSpec((H, 3 * H), lambda b: (0, 0)),        # fused QKV weight
        pl.BlockSpec((H, H), lambda b: (0, 0)),            # output dense weight
        pl.BlockSpec((6, H), lambda b: (0, 0)),            # packed small params
        pl.BlockSpec((1, 1, S), lambda b: (b, 0, 0)),      # additive mask row
    ]
    out_spec_x = pl.BlockSpec((S, H), lambda b: (b, 0))

    if output_attentions:
        out_shape = (jax.ShapeDtypeStruct((BS, H), jnp.float32),
                     jax.ShapeDtypeStruct((B, NH, S, S), jnp.float32))
        out_specs = (out_spec_x,
                     pl.BlockSpec((1, NH, S, S), lambda b: (b, 0, 0, 0)))
    else:
        out_shape = jax.ShapeDtypeStruct((BS, H), jnp.float32)
        out_specs = out_spec_x

    res = pl.pallas_call(
        make_fused_kernel(output_attentions),
        grid=(B,),
        in_specs=in_specs,
        out_specs=out_specs,
        out_shape=out_shape,
        compiler_params=pltpu.CompilerParams(dimension_semantics=("parallel",)),
    )(x2d, wqkv, wo_t, pp, mask3d)

    if output_attentions:
        out2d, probs = res
        return out2d.reshape(B, S, H), probs
    return res.reshape(B, S, H)


# ---------------------------------------------------------------------------
# Pure-JAX reference (mirrors the PyTorch BertAttention forward exactly).
# ---------------------------------------------------------------------------
def reference(hidden_states, attention_mask, params):
    wq, bq, wk, bk, wv, bv, wo, bo, gamma, beta = params
    q = hidden_states @ wq.T + bq
    k = hidden_states @ wk.T + bk
    v = hidden_states @ wv.T + bv

    def split_heads(t):
        return t.reshape(B, S, NH, HD).transpose(0, 2, 1, 3)

    qh, kh, vh = split_heads(q), split_heads(k), split_heads(v)
    scores = jnp.einsum("bhqd,bhkd->bhqk", qh, kh) / math.sqrt(HD)
    scores = scores + attention_mask
    probs = jax.nn.softmax(scores, axis=-1)
    ctx = jnp.einsum("bhqk,bhkd->bhqd", probs, vh)
    ctx = ctx.transpose(0, 2, 1, 3).reshape(B, S, H)
    proj = ctx @ wo.T + bo
    y = proj + hidden_states
    mean = y.mean(-1, keepdims=True)
    var = ((y - mean) ** 2).mean(-1, keepdims=True)
    out = (y - mean) / jnp.sqrt(var + LN_EPS) * gamma + beta
    return out, probs


if __name__ == "__main__":
    key = jax.random.PRNGKey(0)
    keys = jax.random.split(key, 11)

    hidden_states = jax.random.normal(keys[0], (B, S, H), dtype=jnp.float32)

    # nn.Linear weight layout = (out_features, in_features)
    wscale = 1.0 / math.sqrt(H)
    wq = jax.random.normal(keys[1], (H, H), dtype=jnp.float32) * wscale
    wk = jax.random.normal(keys[2], (H, H), dtype=jnp.float32) * wscale
    wv = jax.random.normal(keys[3], (H, H), dtype=jnp.float32) * wscale
    wo = jax.random.normal(keys[4], (H, H), dtype=jnp.float32) * wscale
    bq = jax.random.normal(keys[5], (H,), dtype=jnp.float32) * 0.01
    bk = jax.random.normal(keys[6], (H,), dtype=jnp.float32) * 0.01
    bv = jax.random.normal(keys[7], (H,), dtype=jnp.float32) * 0.01
    bo = jax.random.normal(keys[8], (H,), dtype=jnp.float32) * 0.01
    gamma = 1.0 + 0.1 * jax.random.normal(keys[9], (H,), dtype=jnp.float32)
    beta = 0.01 * jax.random.normal(keys[10], (H,), dtype=jnp.float32)
    params = (wq, bq, wk, bk, wv, bv, wo, bo, gamma, beta)

    # One-time (parameter-load-time) weight preparation.
    prepared = prepare_params(params)

    # Standard BERT additive mask: 0 for valid positions, -10000 for padding.
    valid = jnp.array([[1.0] * S, [1.0] * (S - 2) + [0.0, 0.0]], dtype=jnp.float32)
    attention_mask = (1.0 - valid)[:, None, None, :] * -10000.0           # (B,1,1,S)

    out_ref_, probs_ref_ = reference(hidden_states, attention_mask, params)

    # output_attentions=True path (matches config.output_attentions=True)
    out, probs = bert_attention(hidden_states, attention_mask, prepared,
                                output_attentions=True)
    out = jax.block_until_ready(out)
    probs = jax.block_until_ready(probs)
    np.testing.assert_allclose(np.asarray(out), np.asarray(out_ref_), atol=1e-4, rtol=1e-4)
    np.testing.assert_allclose(np.asarray(probs), np.asarray(probs_ref_), atol=1e-4, rtol=1e-4)

    # output_attentions=False path (probs never allocated / stored)
    out_only = bert_attention(hidden_states, attention_mask, prepared,
                              output_attentions=False)
    out_only = jax.block_until_ready(out_only)
    np.testing.assert_allclose(np.asarray(out_only), np.asarray(out_ref_), atol=1e-4, rtol=1e-4)

    print("KERNEL_OK")
</pallas_src>

<mosaic_0001>
module attributes {stable_mosaic.version = 11 : i64} {
  func.func @kernel(%arg0: i32, %arg1: memref<8x32xf32, #tpu.memory_space<vmem>>, %arg2: memref<32x96xf32, #tpu.memory_space<vmem>>, %arg3: memref<32x32xf32, #tpu.memory_space<vmem>>, %arg4: memref<6x32xf32, #tpu.memory_space<vmem>>, %arg5: memref<1x1x8xf32, #tpu.memory_space<vmem>>, %arg6: memref<8x32xf32, #tpu.memory_space<vmem>>, %arg7: memref<1x4x8x8xf32, #tpu.memory_space<vmem>>) attributes {dimension_semantics = [#tpu.dimension_semantics<parallel>], iteration_bounds = array<i64: 2>, scalar_prefetch = 0 : i64, scratch_operands = 0 : i64, tpu.core_type = #tpu.core_type<tc>, window_params = [{transform_indices = @transform_0, window_bounds = array<i64: 8, 32>}, {pipeline_mode = #tpu.pipeline_mode<synchronous>, transform_indices = @transform_1, window_bounds = array<i64: 32, 96>}, {pipeline_mode = #tpu.pipeline_mode<synchronous>, transform_indices = @transform_2, window_bounds = array<i64: 32, 32>}, {pipeline_mode = #tpu.pipeline_mode<synchronous>, transform_indices = @transform_3, window_bounds = array<i64: 6, 32>}, {transform_indices = @transform_4, window_bounds = array<i64: 1, 1, 8>}, {transform_indices = @transform_5, window_bounds = array<i64: 8, 32>}, {transform_indices = @transform_6, window_bounds = array<i64: 1, 4, 8, 8>}]} {
    %c0 = arith.constant 0 : index
    %c0_0 = arith.constant 0 : index
    %0 = vector.load %arg1[%c0, %c0_0] : memref<8x32xf32, #tpu.memory_space<vmem>>, vector<8x32xf32>
    %c0_1 = arith.constant 0 : index
    %c0_2 = arith.constant 0 : index
    %1 = vector.load %arg4[%c0_1, %c0_2] : memref<6x32xf32, #tpu.memory_space<vmem>>, vector<6x32xf32>
    %c0_3 = arith.constant 0 : index
    %c0_4 = arith.constant 0 : index
    %2 = vector.load %arg2[%c0_3, %c0_4] : memref<32x96xf32, #tpu.memory_space<vmem>>, vector<32x96xf32>
    %cst = arith.constant dense<0.000000e+00> : vector<8x96xf32>
    %3 = tpu.matmul %0, %2, %cst {dimension_numbers = #tpu.dot_dimension_numbers<[1], [0], [0], [1], [0, 0, 1, 1], [], []>} : vector<8x32xf32>, vector<32x96xf32>, vector<8x96xf32> -> vector<8x96xf32>
    %4 = vector.extract_strided_slice %3 {offsets = [0, 0], sizes = [8, 32], strides = [1, 1]} : vector<8x96xf32> to vector<8x32xf32>
    %5 = vector.extract_strided_slice %1 {offsets = [0, 0], sizes = [1, 32], strides = [1, 1]} : vector<6x32xf32> to vector<1x32xf32>
    %6 = vector.broadcast %5 : vector<1x32xf32> to vector<8x32xf32>
    %7 = arith.addf %4, %6 : vector<8x32xf32>
    %8 = vector.extract_strided_slice %3 {offsets = [0, 32], sizes = [8, 32], strides = [1, 1]} : vector<8x96xf32> to vector<8x32xf32>
    %9 = vector.extract_strided_slice %1 {offsets = [1, 0], sizes = [1, 32], strides = [1, 1]} : vector<6x32xf32> to vector<1x32xf32>
    %10 = vector.broadcast %9 : vector<1x32xf32> to vector<8x32xf32>
    %11 = arith.addf %8, %10 : vector<8x32xf32>
    %12 = vector.extract_strided_slice %3 {offsets = [0, 64], sizes = [8, 32], strides = [1, 1]} : vector<8x96xf32> to vector<8x32xf32>
    %13 = vector.extract_strided_slice %1 {offsets = [2, 0], sizes = [1, 32], strides = [1, 1]} : vector<6x32xf32> to vector<1x32xf32>
    %14 = vector.broadcast %13 : vector<1x32xf32> to vector<8x32xf32>
    %15 = arith.addf %12, %14 : vector<8x32xf32>
    %c0_5 = arith.constant 0 : index
    %c0_6 = arith.constant 0 : index
    %c0_7 = arith.constant 0 : index
    %16 = vector.load %arg5[%c0_5, %c0_6, %c0_7] : memref<1x1x8xf32, #tpu.memory_space<vmem>>, vector<1x1x8xf32>
    %17 = vector.shape_cast %16 : vector<1x1x8xf32> to vector<1x8xf32>
    %18 = vector.shape_cast %17 : vector<1x8xf32> to vector<1x8xf32>
    %19 = vector.broadcast %18 : vector<1x8xf32> to vector<8x8xf32>
    %20 = vector.extract_strided_slice %7 {offsets = [0, 0], sizes = [8, 8], strides = [1, 1]} : vector<8x32xf32> to vector<8x8xf32>
    %21 = vector.extract_strided_slice %11 {offsets = [0, 0], sizes = [8, 8], strides = [1, 1]} : vector<8x32xf32> to vector<8x8xf32>
    %22 = vector.extract_strided_slice %15 {offsets = [0, 0], sizes = [8, 8], strides = [1, 1]} : vector<8x32xf32> to vector<8x8xf32>
    %cst_8 = arith.constant dense<0.000000e+00> : vector<8x8xf32>
    %23 = tpu.matmul %20, %21, %cst_8 {dimension_numbers = #tpu.dot_dimension_numbers<[1], [1], [0], [0], [0, 0, 1, 0], [], []>} : vector<8x8xf32>, vector<8x8xf32>, vector<8x8xf32> -> vector<8x8xf32>
    %24 = arith.addf %23, %19 : vector<8x8xf32>
    %cst_9 = arith.constant dense<0xFF800000> : vector<8xf32>
    %25 = vector.multi_reduction <maximumf>, %24, %cst_9 [1] : vector<8x8xf32> to vector<8xf32>
    %26 = vector.shape_cast %25 : vector<8xf32> to vector<8x1xf32>
    %27 = vector.broadcast %26 : vector<8x1xf32> to vector<8x8xf32>
    %28 = arith.subf %24, %27 : vector<8x8xf32>
    %29 = math.exp %28 : vector<8x8xf32>
    %cst_10 = arith.constant dense<0.000000e+00> : vector<8xf32>
    %30 = vector.multi_reduction <add>, %29, %cst_10 [1] : vector<8x8xf32> to vector<8xf32>
    %31 = vector.shape_cast %30 : vector<8xf32> to vector<8x1xf32>
    %32 = tpu.reciprocal %31 : vector<8x1xf32> -> vector<8x1xf32>
    %33 = vector.broadcast %32 : vector<8x1xf32> to vector<8x8xf32>
    %34 = arith.mulf %29, %33 : vector<8x8xf32>
    %cst_11 = arith.constant dense<0.000000e+00> : vector<8x8xf32>
    %35 = tpu.matmul %34, %22, %cst_11 {dimension_numbers = #tpu.dot_dimension_numbers<[1], [0], [0], [1], [0, 0, 1, 1], [], []>} : vector<8x8xf32>, vector<8x8xf32>, vector<8x8xf32> -> vector<8x8xf32>
    %36 = vector.extract_strided_slice %7 {offsets = [0, 8], sizes = [8, 8], strides = [1, 1]} : vector<8x32xf32> to vector<8x8xf32>
    %37 = vector.extract_strided_slice %11 {offsets = [0, 8], sizes = [8, 8], strides = [1, 1]} : vector<8x32xf32> to vector<8x8xf32>
    %38 = vector.extract_strided_slice %15 {offsets = [0, 8], sizes = [8, 8], strides = [1, 1]} : vector<8x32xf32> to vector<8x8xf32>
    %cst_12 = arith.constant dense<0.000000e+00> : vector<8x8xf32>
    %39 = tpu.matmul %36, %37, %cst_12 {dimension_numbers = #tpu.dot_dimension_numbers<[1], [1], [0], [0], [0, 0, 1, 0], [], []>} : vector<8x8xf32>, vector<8x8xf32>, vector<8x8xf32> -> vector<8x8xf32>
    %40 = arith.addf %39, %19 : vector<8x8xf32>
    %cst_13 = arith.constant dense<0xFF800000> : vector<8xf32>
    %41 = vector.multi_reduction <maximumf>, %40, %cst_13 [1] : vector<8x8xf32> to vector<8xf32>
    %42 = vector.shape_cast %41 : vector<8xf32> to vector<8x1xf32>
    %43 = vector.broadcast %42 : vector<8x1xf32> to vector<8x8xf32>
    %44 = arith.subf %40, %43 : vector<8x8xf32>
    %45 = math.exp %44 : vector<8x8xf32>
    %cst_14 = arith.constant dense<0.000000e+00> : vector<8xf32>
    %46 = vector.multi_reduction <add>, %45, %cst_14 [1] : vector<8x8xf32> to vector<8xf32>
    %47 = vector.shape_cast %46 : vector<8xf32> to vector<8x1xf32>
    %48 = tpu.reciprocal %47 : vector<8x1xf32> -> vector<8x1xf32>
    %49 = vector.broadcast %48 : vector<8x1xf32> to vector<8x8xf32>
    %50 = arith.mulf %45, %49 : vector<8x8xf32>
    %cst_15 = arith.constant dense<0.000000e+00> : vector<8x8xf32>
    %51 = tpu.matmul %50, %38, %cst_15 {dimension_numbers = #tpu.dot_dimension_numbers<[1], [0], [0], [1], [0, 0, 1, 1], [], []>} : vector<8x8xf32>, vector<8x8xf32>, vector<8x8xf32> -> vector<8x8xf32>
    %52 = vector.extract_strided_slice %7 {offsets = [0, 16], sizes = [8, 8], strides = [1, 1]} : vector<8x32xf32> to vector<8x8xf32>
    %53 = vector.extract_strided_slice %11 {offsets = [0, 16], sizes = [8, 8], strides = [1, 1]} : vector<8x32xf32> to vector<8x8xf32>
    %54 = vector.extract_strided_slice %15 {offsets = [0, 16], sizes = [8, 8], strides = [1, 1]} : vector<8x32xf32> to vector<8x8xf32>
    %cst_16 = arith.constant dense<0.000000e+00> : vector<8x8xf32>
    %55 = tpu.matmul %52, %53, %cst_16 {dimension_numbers = #tpu.dot_dimension_numbers<[1], [1], [0], [0], [0, 0, 1, 0], [], []>} : vector<8x8xf32>, vector<8x8xf32>, vector<8x8xf32> -> vector<8x8xf32>
    %56 = arith.addf %55, %19 : vector<8x8xf32>
    %cst_17 = arith.constant dense<0xFF800000> : vector<8xf32>
    %57 = vector.multi_reduction <maximumf>, %56, %cst_17 [1] : vector<8x8xf32> to vector<8xf32>
    %58 = vector.shape_cast %57 : vector<8xf32> to vector<8x1xf32>
    %59 = vector.broadcast %58 : vector<8x1xf32> to vector<8x8xf32>
    %60 = arith.subf %56, %59 : vector<8x8xf32>
    %61 = math.exp %60 : vector<8x8xf32>
    %cst_18 = arith.constant dense<0.000000e+00> : vector<8xf32>
    %62 = vector.multi_reduction <add>, %61, %cst_18 [1] : vector<8x8xf32> to vector<8xf32>
    %63 = vector.shape_cast %62 : vector<8xf32> to vector<8x1xf32>
    %64 = tpu.reciprocal %63 : vector<8x1xf32> -> vector<8x1xf32>
    %65 = vector.broadcast %64 : vector<8x1xf32> to vector<8x8xf32>
    %66 = arith.mulf %61, %65 : vector<8x8xf32>
    %cst_19 = arith.constant dense<0.000000e+00> : vector<8x8xf32>
    %67 = tpu.matmul %66, %54, %cst_19 {dimension_numbers = #tpu.dot_dimension_numbers<[1], [0], [0], [1], [0, 0, 1, 1], [], []>} : vector<8x8xf32>, vector<8x8xf32>, vector<8x8xf32> -> vector<8x8xf32>
    %68 = vector.extract_strided_slice %7 {offsets = [0, 24], sizes = [8, 8], strides = [1, 1]} : vector<8x32xf32> to vector<8x8xf32>
    %69 = vector.extract_strided_slice %11 {offsets = [0, 24], sizes = [8, 8], strides = [1, 1]} : vector<8x32xf32> to vector<8x8xf32>
    %70 = vector.extract_strided_slice %15 {offsets = [0, 24], sizes = [8, 8], strides = [1, 1]} : vector<8x32xf32> to vector<8x8xf32>
    %cst_20 = arith.constant dense<0.000000e+00> : vector<8x8xf32>
    %71 = tpu.matmul %68, %69, %cst_20 {dimension_numbers = #tpu.dot_dimension_numbers<[1], [1], [0], [0], [0, 0, 1, 0], [], []>} : vector<8x8xf32>, vector<8x8xf32>, vector<8x8xf32> -> vector<8x8xf32>
    %72 = arith.addf %71, %19 : vector<8x8xf32>
    %cst_21 = arith.constant dense<0xFF800000> : vector<8xf32>
    %73 = vector.multi_reduction <maximumf>, %72, %cst_21 [1] : vector<8x8xf32> to vector<8xf32>
    %74 = vector.shape_cast %73 : vector<8xf32> to vector<8x1xf32>
    %75 = vector.broadcast %74 : vector<8x1xf32> to vector<8x8xf32>
    %76 = arith.subf %72, %75 : vector<8x8xf32>
    %77 = math.exp %76 : vector<8x8xf32>
    %cst_22 = arith.constant dense<0.000000e+00> : vector<8xf32>
    %78 = vector.multi_reduction <add>, %77, %cst_22 [1] : vector<8x8xf32> to vector<8xf32>
    %79 = vector.shape_cast %78 : vector<8xf32> to vector<8x1xf32>
    %80 = tpu.reciprocal %79 : vector<8x1xf32> -> vector<8x1xf32>
    %81 = vector.broadcast %80 : vector<8x1xf32> to vector<8x8xf32>
    %82 = arith.mulf %77, %81 : vector<8x8xf32>
    %cst_23 = arith.constant dense<0.000000e+00> : vector<8x8xf32>
    %83 = tpu.matmul %82, %70, %cst_23 {dimension_numbers = #tpu.dot_dimension_numbers<[1], [0], [0], [1], [0, 0, 1, 1], [], []>} : vector<8x8xf32>, vector<8x8xf32>, vector<8x8xf32> -> vector<8x8xf32>
    %84 = tpu.concatenate %35, %51, %67, %83 in 1 : vector<8x8xf32>, vector<8x8xf32>, vector<8x8xf32>, vector<8x8xf32> -> vector<8x32xf32>
    %c0_24 = arith.constant 0 : index
    %c0_25 = arith.constant 0 : index
    %85 = vector.load %arg3[%c0_24, %c0_25] : memref<32x32xf32, #tpu.memory_space<vmem>>, vector<32x32xf32>
    %cst_26 = arith.constant dense<0.000000e+00> : vector<8x32xf32>
    %86 = tpu.matmul %84, %85, %cst_26 {dimension_numbers = #tpu.dot_dimension_numbers<[1], [0], [0], [1], [0, 0, 1, 1], [], []>} : vector<8x32xf32>, vector<32x32xf32>, vector<8x32xf32> -> vector<8x32xf32>
    %87 = vector.extract_strided_slice %1 {offsets = [3, 0], sizes = [1, 32], strides = [1, 1]} : vector<6x32xf32> to vector<1x32xf32>
    %88 = vector.broadcast %87 : vector<1x32xf32> to vector<8x32xf32>
    %89 = arith.addf %86, %88 : vector<8x32xf32>
    %90 = arith.addf %89, %0 : vector<8x32xf32>
    %cst_27 = arith.constant dense<0.000000e+00> : vector<8xf32>
    %91 = vector.multi_reduction <add>, %90, %cst_27 [1] : vector<8x32xf32> to vector<8xf32>
    %92 = vector.shape_cast %91 : vector<8xf32> to vector<8x1xf32>
    %cst_28 = arith.constant 3.200000e+01 : f32
    %93 = vector.broadcast %cst_28 : f32 to vector<8x1xf32>
    %94 = arith.divf %92, %93 : vector<8x1xf32>
    %95 = vector.broadcast %94 : vector<8x1xf32> to vector<8x32xf32>
    %96 = arith.subf %90, %95 : vector<8x32xf32>
    %97 = arith.mulf %96, %96 : vector<8x32xf32>
    %cst_29 = arith.constant dense<0.000000e+00> : vector<8xf32>
    %98 = vector.multi_reduction <add>, %97, %cst_29 [1] : vector<8x32xf32> to vector<8xf32>
    %99 = vector.shape_cast %98 : vector<8xf32> to vector<8x1xf32>
    %cst_30 = arith.constant 3.200000e+01 : f32
    %100 = vector.broadcast %cst_30 : f32 to vector<8x1xf32>
    %101 = arith.divf %99, %100 : vector<8x1xf32>
    %cst_31 = arith.constant 9.99999996E-13 : f32
    %102 = vector.broadcast %cst_31 : f32 to vector<8x1xf32>
    %103 = arith.addf %101, %102 : vector<8x1xf32>
    %104 = math.rsqrt %103 : vector<8x1xf32>
    %105 = vector.broadcast %104 : vector<8x1xf32> to vector<8x32xf32>
    %106 = arith.mulf %96, %105 : vector<8x32xf32>
    %107 = vector.extract_strided_slice %1 {offsets = [4, 0], sizes = [1, 32], strides = [1, 1]} : vector<6x32xf32> to vector<1x32xf32>
    %108 = vector.broadcast %107 : vector<1x32xf32> to vector<8x32xf32>
    %109 = arith.mulf %106, %108 : vector<8x32xf32>
    %110 = vector.extract_strided_slice %1 {offsets = [5, 0], sizes = [1, 32], strides = [1, 1]} : vector<6x32xf32> to vector<1x32xf32>
    %111 = vector.broadcast %110 : vector<1x32xf32> to vector<8x32xf32>
    %112 = arith.addf %109, %111 : vector<8x32xf32>
    %c0_32 = arith.constant 0 : index
    %c0_33 = arith.constant 0 : index
    %113 = vector.load %arg6[%c0_32, %c0_33] : memref<8x32xf32, #tpu.memory_space<vmem>>, vector<8x32xf32>
    tpu.vector_store %arg6[%c0_32, %c0_33], %112 {strides = array<i32>} : memref<8x32xf32, #tpu.memory_space<vmem>>, vector<8x32xf32>,
    %114 = vector.shape_cast %34 : vector<8x8xf32> to vector<1x8x8xf32>
    %115 = vector.shape_cast %50 : vector<8x8xf32> to vector<1x8x8xf32>
    %116 = vector.shape_cast %66 : vector<8x8xf32> to vector<1x8x8xf32>
    %117 = vector.shape_cast %82 : vector<8x8xf32> to vector<1x8x8xf32>
    %118 = tpu.concatenate %114, %115, %116, %117 in 0 : vector<1x8x8xf32>, vector<1x8x8xf32>, vector<1x8x8xf32>, vector<1x8x8xf32> -> vector<4x8x8xf32>
    %c0_34 = arith.constant 0 : index
    %c0_35 = arith.constant 0 : index
    %c0_36 = arith.constant 0 : index
    %c0_37 = arith.constant 0 : index
    %119 = vector.load %arg7[%c0_34, %c0_35, %c0_36, %c0_37] : memref<1x4x8x8xf32, #tpu.memory_space<vmem>>, vector<1x4x8x8xf32>
    %120 = vector.shape_cast %119 : vector<1x4x8x8xf32> to vector<4x8x8xf32>
    %121 = vector.shape_cast %118 : vector<4x8x8xf32> to vector<1x4x8x8xf32>
    tpu.vector_store %arg7[%c0_34, %c0_35, %c0_36, %c0_37], %121 {strides = array<i32>} : memref<1x4x8x8xf32, #tpu.memory_space<vmem>>, vector<1x4x8x8xf32>,
    return
  }
  func.func @transform_0(%arg0: i32) -> (i32, i32) {
    %c0_i32 = arith.constant 0 : i32
    %c0_i32_0 = arith.constant 0 : i32
    return %arg0, %c0_i32 : i32, i32
  }
  func.func @transform_1(%arg0: i32) -> (i32, i32) {
    %c0_i32 = arith.constant 0 : i32
    %c0_i32_0 = arith.constant 0 : i32
    %c0_i32_1 = arith.constant 0 : i32
    return %c0_i32, %c0_i32_0 : i32, i32
  }
  func.func @transform_2(%arg0: i32) -> (i32, i32) {
    %c0_i32 = arith.constant 0 : i32
    %c0_i32_0 = arith.constant 0 : i32
    %c0_i32_1 = arith.constant 0 : i32
    return %c0_i32, %c0_i32_0 : i32, i32
  }
  func.func @transform_3(%arg0: i32) -> (i32, i32) {
    %c0_i32 = arith.constant 0 : i32
    %c0_i32_0 = arith.constant 0 : i32
    %c0_i32_1 = arith.constant 0 : i32
    return %c0_i32, %c0_i32_0 : i32, i32
  }
  func.func @transform_4(%arg0: i32) -> (i32, i32, i32) {
    %c0_i32 = arith.constant 0 : i32
    %c0_i32_0 = arith.constant 0 : i32
    %c0_i32_1 = arith.constant 0 : i32
    return %arg0, %c0_i32, %c0_i32_0 : i32, i32, i32
  }
  func.func @transform_5(%arg0: i32) -> (i32, i32) {
    %c0_i32 = arith.constant 0 : i32
    %c0_i32_0 = arith.constant 0 : i32
    return %arg0, %c0_i32 : i32, i32
  }
  func.func @transform_6(%arg0: i32) -> (i32, i32, i32, i32) {
    %c0_i32 = arith.constant 0 : i32
    %c0_i32_0 = arith.constant 0 : i32
    %c0_i32_1 = arith.constant 0 : i32
    %c0_i32_2 = arith.constant 0 : i32
    return %arg0, %c0_i32, %c0_i32_0, %c0_i32_1 : i32, i32, i32, i32
  }
}

</mosaic_0001>

<llo_original>
// kernel: tpu_custom_call.1
$region0: #{tpu_custom_call.1}
  #allocation0 [shape = 'u32[]', space=smem, size = 0x4, offset = 0x4, fixed_abs, tag = 'smem constant byte address 0x4 - core index']
  #allocation1 [shape = 'u32[144,128]{1,0:T(1,128)}', space=vmem, size = 0x12000, scoped, tag = 'internal scratch']
  %s0 = inlined_call_operand.hbm [shape: f32[16,32], index: 0, kind: input, shape index: {}]
  %s1 = inlined_call_operand.hbm [shape: f32[32,96], index: 1, kind: input, shape index: {}]
  %s2 = inlined_call_operand.hbm [shape: f32[32,32], index: 2, kind: input, shape index: {}]
  %s3 = inlined_call_operand.hbm [shape: f32[6,32], index: 3, kind: input, shape index: {}]
  %s4 = inlined_call_operand.vmem [shape: f32[2,1,8], index: 4, kind: input, shape index: {}]
  %s5 = inlined_call_operand.hbm [shape: f32[16,32], index: 5, kind: output, shape index: {0}]
  %s6 = inlined_call_operand.hbm [shape: f32[2,4,8,8], index: 6, kind: output, shape index: {1}]
  %7 = xla_tuple %s5, %s6
  %s8 = sld [smem:[#allocation0]]
  $region77: #{tpu_custom_call.1} parent=0
    _
  %s10 = ssub.s32 1, %s8
  %s11 = scalar_select 0, %s10, %s8
  $region1: #{tpu_custom_call.1} parent=0
    #allocation2 [shape = 'u8[8192]{0}', space=vmem, size = 0x2000, scoped, tag = 'input window, operand 0']
    #allocation3 [shape = 's32[2]{0}', space=sflag, size = 0x8, scoped, tag = 'scoped memory for tpu_custom_call.1']
    #allocation4 [shape = 's32[2]{0}', space=sflag, size = 0x8, scoped, tag = 'scoped memory for tpu_custom_call.1']
    #allocation5 [shape = 'u8[16384]{0}', space=vmem, size = 0x4000, scoped, tag = 'input window, operand 1, single buffered']
    #allocation6 [shape = 's32[1]{0}', space=sflag, size = 0x4, scoped, tag = 'scoped memory for tpu_custom_call.1']
    #allocation7 [shape = 'u8[16384]{0}', space=vmem, size = 0x4000, scoped, tag = 'input window, operand 2, single buffered']
    #allocation8 [shape = 'u8[4096]{0}', space=vmem, size = 0x1000, scoped, tag = 'input window, operand 3, single buffered']
    #allocation9 [shape = 's32[1]{0}', space=sflag, size = 0x4, scoped, tag = 'scoped memory for tpu_custom_call.1']
    #allocation10 [shape = 'u8[8192]{0}', space=vmem, size = 0x2000, scoped, tag = 'output window, operand 0']
    #allocation11 [shape = 'u8[32768]{0}', space=vmem, size = 0x8000, scoped, tag = 'output window, operand 1']
    #allocation12 [shape = 's32[2]{0}', space=sflag, size = 0x8, scoped, tag = 'scoped memory for tpu_custom_call.1']
    %12 = vsyncpa [#allocation3], 0
    %s13 = scalar_lea.sflag [#allocation3], 1
    %14 = vsyncpa %s13, 0
    %15 = vsyncpa [#allocation6], 0
    %16 = vsyncpa [#allocation9], 0
    %17 = vsyncpa [#allocation4], 0
    %s18 = scalar_lea.sflag [#allocation4], 1
    %19 = vsyncpa %s18, 0
    %20 = vsyncpa [#allocation12], 0
    %s21 = scalar_lea.sflag [#allocation12], 1
    %22 = vsyncpa %s21, 0
    loop: start=0, step=1, limit=4
    $region2: #{tpu_custom_call.1} parent=1 // loop_pre_header
      _
    $region3: #{tpu_custom_call.1} parent=1 // loop_header
      %s24 = sphi 0, %s28
      %p25 = scmp.ge.s32.totalorder %s24, 4
      %s34 = sphi 0, %s36
      %s37 = sphi 0, %s34
      %s38 = sphi 0, %s37
      %s54 = sphi 0, %s38
      %s58 = sphi 0, %s58
      %s60 = sphi 0, %s58
      %s61 = sphi 0, %s60
      %s75 = sphi 0, %s61
      %s79 = sphi 0, %s79
      %s81 = sphi 0, %s79
      %s82 = sphi 0, %s81
      %s96 = sphi 0, %s82
      %s100 = sphi 0, %s100
      %s102 = sphi 0, %s100
      %s103 = sphi 0, %s102
      %s117 = sphi 0, %s103
      %s123 = sphi 0, %s125
      %s126 = sphi 0, %s123
      %s127 = sphi 0, %s126
      %s143 = sphi 0, %s127
      %s149 = sphi 0, %s151
      %s152 = sphi 0, %s149
      %s153 = sphi 0, %s152
      %s169 = sphi 0, %s153
      %s175 = sphi 0, %s177
      %s178 = sphi 0, %s175
      %s179 = sphi 0, %s178
      %s195 = sphi 0, %s179
    $region4: #{tpu_custom_call.1} parent=1 // loop_header_branch
      %27 = sbr.rel (%p25) target = $region8
    $region5: #{tpu_custom_call.1} parent=1 // loop_body
      %s29 = ssub.s32 %s24, 1
      %s30 = ssub.s32 %s24, 2
      %s31 = sadd.s32 %s24, 1
      %s32 = ssub.s32 %s24, %s31
      %p33 = scmp.eq.s32.totalorder %s32, 0
      %s35 = sadd.s32 %s34, 1
      %s36 = scalar_select %p33, %s34, %s35
      %p39 = pneg %p33
      %p40 = scmp.eq.s32.totalorder %s24, 1
      %p41 = por %p39, %p40
      %p42 = scmp.ne.s32.totalorder %s34, %s37
      %p43 = scmp.eq.s32.totalorder %s24, 0
      %p44 = por %p42, %p43
      %p45 = scmp.ne.s32.totalorder %s34, %s37
      %p46 = scmp.eq.s32.totalorder %s29, 1
      %p47 = por %p45, %p46
      %p48 = scmp.ne.s32.totalorder %s37, %s38
      %p49 = scmp.eq.s32.totalorder %s29, 0
      %p50 = por %p48, %p49
      %p51 = scmp.ne.s32.totalorder %s37, %s38
      %p52 = scmp.eq.s32.totalorder %s30, 1
      %p53 = por %p51, %p52
      %p55 = scmp.ne.s32.totalorder %s38, %s54
      %p56 = scmp.eq.s32.totalorder %s30, 0
      %p57 = por %p55, %p56
      %s59 = sadd.s32 %s58, 1
      %p62 = scmp.eq.s32.totalorder %s24, 1
      %p63 = scmp.ne.s32.totalorder %s58, %s60
      %p64 = scmp.eq.s32.totalorder %s24, 0
      %p65 = por %p63, %p64
      %p66 = scmp.ne.s32.totalorder %s58, %s60
      %p67 = scmp.eq.s32.totalorder %s29, 1
      %p68 = por %p66, %p67
      %p69 = scmp.ne.s32.totalorder %s60, %s61
      %p70 = scmp.eq.s32.totalorder %s29, 0
      %p71 = por %p69, %p70
      %p72 = scmp.ne.s32.totalorder %s60, %s61
      %p73 = scmp.eq.s32.totalorder %s30, 1
      %p74 = por %p72, %p73
      %p76 = scmp.ne.s32.totalorder %s61, %s75
      %p77 = scmp.eq.s32.totalorder %s30, 0
      %p78 = por %p76, %p77
      %s80 = sadd.s32 %s79, 1
      %p83 = scmp.eq.s32.totalorder %s24, 1
      %p84 = scmp.ne.s32.totalorder %s79, %s81
      %p85 = scmp.eq.s32.totalorder %s24, 0
      %p86 = por %p84, %p85
      %p87 = scmp.ne.s32.totalorder %s79, %s81
      %p88 = scmp.eq.s32.totalorder %s29, 1
      %p89 = por %p87, %p88
      %p90 = scmp.ne.s32.totalorder %s81, %s82
      %p91 = scmp.eq.s32.totalorder %s29, 0
      %p92 = por %p90, %p91
      %p93 = scmp.ne.s32.totalorder %s81, %s82
      %p94 = scmp.eq.s32.totalorder %s30, 1
      %p95 = por %p93, %p94
      %p97 = scmp.ne.s32.totalorder %s82, %s96
      %p98 = scmp.eq.s32.totalorder %s30, 0
      %p99 = por %p97, %p98
      %s101 = sadd.s32 %s100, 1
      %p104 = scmp.eq.s32.totalorder %s24, 1
      %p105 = scmp.ne.s32.totalorder %s100, %s102
      %p106 = scmp.eq.s32.totalorder %s24, 0
      %p107 = por %p105, %p106
      %p108 = scmp.ne.s32.totalorder %s100, %s102
      %p109 = scmp.eq.s32.totalorder %s29, 1
      %p110 = por %p108, %p109
      %p111 = scmp.ne.s32.totalorder %s102, %s103
      %p112 = scmp.eq.s32.totalorder %s29, 0
      %p113 = por %p111, %p112
      %p114 = scmp.ne.s32.totalorder %s102, %s103
      %p115 = scmp.eq.s32.totalorder %s30, 1
      %p116 = por %p114, %p115
      %p118 = scmp.ne.s32.totalorder %s103, %s117
      %p119 = scmp.eq.s32.totalorder %s30, 0
      %p120 = por %p118, %p119
      %s121 = ssub.s32 %s24, %s31
      %p122 = scmp.eq.s32.totalorder %s121, 0
      %s124 = sadd.s32 %s123, 1
      %s125 = scalar_select %p122, %s123, %s124
      %p128 = pneg %p122
      %p129 = scmp.eq.s32.totalorder %s24, 1
      %p130 = por %p128, %p129
      %p131 = scmp.ne.s32.totalorder %s123, %s126
      %p132 = scmp.eq.s32.totalorder %s24, 0
      %p133 = por %p131, %p132
      %p134 = scmp.ne.s32.totalorder %s123, %s126
      %p135 = scmp.eq.s32.totalorder %s29, 1
      %p136 = por %p134, %p135
      %p137 = scmp.ne.s32.totalorder %s126, %s127
      %p138 = scmp.eq.s32.totalorder %s29, 0
      %p139 = por %p137, %p138
      %p140 = scmp.ne.s32.totalorder %s126, %s127
      %p141 = scmp.eq.s32.totalorder %s30, 1
      %p142 = por %p140, %p141
      %p144 = scmp.ne.s32.totalorder %s127, %s143
      %p145 = scmp.eq.s32.totalorder %s30, 0
      %p146 = por %p144, %p145
      %s147 = ssub.s32 %s24, %s31
      %p148 = scmp.eq.s32.totalorder %s147, 0
      %s150 = sadd.s32 %s149, 1
      %s151 = scalar_select %p148, %s149, %s150
      %p154 = pneg %p148
      %p155 = scmp.eq.s32.totalorder %s24, 1
      %p156 = por %p154, %p155
      %p157 = scmp.ne.s32.totalorder %s149, %s152
      %p158 = scmp.eq.s32.totalorder %s24, 0
      %p159 = por %p157, %p158
      %p160 = scmp.ne.s32.totalorder %s149, %s152
      %p161 = scmp.eq.s32.totalorder %s29, 1
      %p162 = por %p160, %p161
      %p163 = scmp.ne.s32.totalorder %s152, %s153
      %p164 = scmp.eq.s32.totalorder %s29, 0
      %p165 = por %p163, %p164
      %p166 = scmp.ne.s32.totalorder %s152, %s153
      %p167 = scmp.eq.s32.totalorder %s30, 1
      %p168 = por %p166, %p167
      %p170 = scmp.ne.s32.totalorder %s153, %s169
      %p171 = scmp.eq.s32.totalorder %s30, 0
      %p172 = por %p170, %p171
      %s173 = ssub.s32 %s24, %s31
      %p174 = scmp.eq.s32.totalorder %s173, 0
      %s176 = sadd.s32 %s175, 1
      %s177 = scalar_select %p174, %s175, %s176
      %p180 = pneg %p174
      %p181 = scmp.eq.s32.totalorder %s24, 1
      %p182 = por %p180, %p181
      %p183 = scmp.ne.s32.totalorder %s175, %s178
      %p184 = scmp.eq.s32.totalorder %s24, 0
      %p185 = por %p183, %p184
      %p186 = scmp.ne.s32.totalorder %s175, %s178
      %p187 = scmp.eq.s32.totalorder %s29, 1
      %p188 = por %p186, %p187
      %p189 = scmp.ne.s32.totalorder %s178, %s179
      %p190 = scmp.eq.s32.totalorder %s29, 0
      %p191 = por %p189, %p190
      %p192 = scmp.ne.s32.totalorder %s178, %s179
      %p193 = scmp.eq.s32.totalorder %s30, 1
      %p194 = por %p192, %p193
      %p196 = scmp.ne.s32.totalorder %s179, %s195
      %p197 = scmp.eq.s32.totalorder %s30, 0
      %p198 = por %p196, %p197
      %p199 = scmp.le.s32.totalorder 1, %s24
      %p200 = scmp.lt.s32.totalorder %s24, 3
      %p201 = pnand %p199, %p200
      %p202 = pneg %p201
      // Predicated region
      $region9: #{tpu_custom_call.1} parent=5 // pred_check
        _
      $region10: #{tpu_custom_call.1} parent=5 // pred_check_branch
        %204 = sbr.rel (%p201) target = $region12
      $region11: #{tpu_custom_call.1} parent=5 // pred_region
        %s205 = ssub.s32 %s24, 1
        // Predicated region
        $region13: #{tpu_custom_call.1} parent=11 // pred_check
          %p206 = pneg %p71
        $region14: #{tpu_custom_call.1} parent=11 // pred_check_branch
          %208 = sbr.rel (%p206) target = $region16
        $region15: #{tpu_custom_call.1} parent=11 // pred_region
          %s210 = ssub.s32 512, 512
          %211 = vsyncadd [#allocation6], %s210
          %s212 = sshll.u32 [#allocation5], 4
          %s213 = int_to_ptr.vmem [resolvable:$true] %s212
          %218 = dma.hbm_to_vmem [thread:$0]  %s1, 512, %s213, [#allocation6], 128, 128, 8
        $region16: #{tpu_custom_call.1} parent=11 // pred_fallthru
          _
        // Predicated region
        $region17: #{tpu_custom_call.1} parent=11 // pred_check
          %p219 = pneg %p92
        $region18: #{tpu_custom_call.1} parent=11 // pred_check_branch
          %221 = sbr.rel (%p219) target = $region20
        $region19: #{tpu_custom_call.1} parent=11 // pred_region
          %s223 = ssub.s32 512, 512
          %224 = vsyncadd [#allocation6], %s223
          %s225 = sshll.u32 [#allocation7], 4
          %s226 = int_to_ptr.vmem [resolvable:$true] %s225
          %231 = dma.hbm_to_vmem [thread:$0]  %s2, 512, %s226, [#allocation6], 128, 128, 8
        $region20: #{tpu_custom_call.1} parent=11 // pred_fallthru
          _
        // Predicated region
        $region21: #{tpu_custom_call.1} parent=11 // pred_check
          %p232 = pneg %p113
        $region22: #{tpu_custom_call.1} parent=11 // pred_check_branch
          %234 = sbr.rel (%p232) target = $region24
        $region23: #{tpu_custom_call.1} parent=11 // pred_region
          %s236 = ssub.s32 128, 128
          %237 = vsyncadd [#allocation9], %s236
          %s239 = sshll.u32 [#allocation8], 4
          %s240 = int_to_ptr.vmem [resolvable:$true] %s239
          %242 = dma.hbm_to_vmem [thread:$0]  %s3, 128, %s240, [#allocation9]
        $region24: #{tpu_custom_call.1} parent=11 // pred_fallthru
          _
      $region12: #{tpu_custom_call.1} parent=5 // pred_fallthru
        _
      %p243 = scmp.lt.s32.totalorder %s24, 2
      // Predicated region
      $region25: #{tpu_custom_call.1} parent=5 // pred_check
        %p244 = pneg %p243
      $region26: #{tpu_custom_call.1} parent=5 // pred_check_branch
        %246 = sbr.rel (%p244) target = $region28
      $region27: #{tpu_custom_call.1} parent=5 // pred_region
        // Predicated region
        $region29: #{tpu_custom_call.1} parent=27 // pred_check
          %p247 = pneg %p44
        $region30: #{tpu_custom_call.1} parent=27 // pred_check_branch
          %249 = sbr.rel (%p247) target = $region32
        $region31: #{tpu_custom_call.1} parent=27 // pred_region
          %s250 = sand.u32 %s34, 1
          %s251 = scalar_lea.sflag [#allocation3], %s250
          %s252 = sand.u32 %s34, 1
          %s253 = smul.addr %s252, 8
          %s254 = scalar_lea.vmem [#allocation2], %s253
          %s256 = ssub.s32 128, 128
          %257 = vsyncadd %s251, %s256
          %s258 = smul.addr %s24, 128
          %s259 = scalar_lea.hbm %s0, %s258
          %s261 = sshll.u32 %s254, 4
          %s262 = int_to_ptr.vmem [resolvable:$true] %s261
          %264 = dma.hbm_to_vmem [thread:$0]  %s259, 128, %s262, %s251
        $region32: #{tpu_custom_call.1} parent=27 // pred_fallthru
          _
        // Predicated region
        $region33: #{tpu_custom_call.1} parent=27 // pred_check
          %p265 = pneg %p133
        $region34: #{tpu_custom_call.1} parent=27 // pred_check_branch
          %267 = sbr.rel (%p265) target = $region36
        $region35: #{tpu_custom_call.1} parent=27 // pred_region
          %p268 = scmp.lt.s32.totalorder %s24, 1
          %s269 = scalar_select %p268, %s24, 1
          %s270 = scalar_lea.vmem %s4, %s269
        $region36: #{tpu_custom_call.1} parent=27 // pred_fallthru
          _
      $region28: #{tpu_custom_call.1} parent=5 // pred_fallthru
        _
      %p271 = scmp.le.s32.totalorder 1, %s24
      %p272 = scmp.lt.s32.totalorder %s24, 3
      %p273 = pnand %p271, %p272
      %p274 = pneg %p273
      // Predicated region
      $region37: #{tpu_custom_call.1} parent=5 // pred_check
        _
      $region38: #{tpu_custom_call.1} parent=5 // pred_check_branch
        %276 = sbr.rel (%p273) target = $region40
      $region39: #{tpu_custom_call.1} parent=5 // pred_region
        %s277 = ssub.s32 %s24, 1
        %s278 = sand.u32 %s37, 1
        %s279 = scalar_lea.sflag [#allocation3], %s278
        %s280 = sand.u32 %s37, 1
        %s281 = smul.addr %s280, 8
        %s282 = scalar_lea.vmem [#allocation2], %s281
        // Predicated region
        $region41: #{tpu_custom_call.1} parent=39 // pred_check
          %p283 = pneg %p50
        $region42: #{tpu_custom_call.1} parent=39 // pred_check_branch
          %285 = sbr.rel (%p283) target = $region44
        $region43: #{tpu_custom_call.1} parent=39 // pred_region
          %286 = dma.done %s279, 128
        $region44: #{tpu_custom_call.1} parent=39 // pred_fallthru
          _
        // Predicated region
        $region45: #{tpu_custom_call.1} parent=39 // pred_check
          %p287 = pneg %p71
        $region46: #{tpu_custom_call.1} parent=39 // pred_check_branch
          %289 = sbr.rel (%p287) target = $region48
        $region47: #{tpu_custom_call.1} parent=39 // pred_region
          %290 = dma.done [#allocation6], 512
        $region48: #{tpu_custom_call.1} parent=39 // pred_fallthru
          _
        // Predicated region
        $region49: #{tpu_custom_call.1} parent=39 // pred_check
          %p291 = pneg %p92
        $region50: #{tpu_custom_call.1} parent=39 // pred_check_branch
          %293 = sbr.rel (%p291) target = $region52
        $region51: #{tpu_custom_call.1} parent=39 // pred_region
          %294 = dma.done [#allocation6], 512
        $region52: #{tpu_custom_call.1} parent=39 // pred_fallthru
          _
        // Predicated region
        $region53: #{tpu_custom_call.1} parent=39 // pred_check
          %p295 = pneg %p113
        $region54: #{tpu_custom_call.1} parent=39 // pred_check_branch
          %297 = sbr.rel (%p295) target = $region56
        $region55: #{tpu_custom_call.1} parent=39 // pred_region
          %298 = dma.done [#allocation9], 128
        $region56: #{tpu_custom_call.1} parent=39 // pred_fallthru
          _
        %s299 = sand.u32 %s37, 1
        %s300 = scalar_lea.sflag [#allocation3], %s299
        %s301 = sand.u32 %s37, 1
        %s302 = smul.addr %s301, 8
        %s303 = scalar_lea.vmem [#allocation2], %s302
        %p304 = pneg %p50
        %p305 = pneg %p47
        %p306 = pneg %p71
        %p307 = pneg %p68
        %p308 = pneg %p92
        %p309 = pneg %p89
        %p310 = pneg %p113
        %p311 = pneg %p110
        %p312 = scmp.lt.s32.totalorder %s29, 1
        %s313 = scalar_select %p312, %s29, 1
        %s314 = scalar_lea.vmem %s4, %s313
        %p315 = pneg %p139
        %p316 = pneg %p136
        %p317 = pneg %p165
        %p318 = pneg %p162
        %s319 = sand.u32 %s152, 1
        %s320 = scalar_lea.sflag [#allocation4], %s319
        %s321 = sand.u32 %s152, 1
        %s322 = smul.addr %s321, 8
        %s323 = scalar_lea.vmem [#allocation10], %s322
        %p324 = pneg %p191
        %p325 = pneg %p188
        %s326 = sand.u32 %s178, 1
        %s327 = scalar_lea.sflag [#allocation12], %s326
        %s328 = sand.u32 %s178, 1
        %s329 = smul.addr %s328, 32
        %s330 = scalar_lea.vmem [#allocation11], %s329
        %p331 = scmp.lt.s32.totalorder %s29, 1
        %s332 = scalar_select %p331, %s29, 1
        %s333 = scalar_lea.vmem %s4, %s332
        %v334 = vld [vmem:[%s282] sm:$0xff]
        %v335 = vld [vmem:[#allocation8] sm:$0x3f]
        %v336 = vld [vmem:[#allocation5] sm:$0xff]
        %v337 = vld [vmem:[#allocation5 + $0x8] sm:$0xff]
        %v338 = vld [vmem:[#allocation5 + $0x10] sm:$0xff]
        %v339 = vld [vmem:[#allocation5 + $0x18] sm:$0xff]
        %vm340 = vcmask 261120
        %v342 = vsel %vm340, %v334, 0
        %344 = vmatprep.subr.mxu0 0.0
        %345 = vmatpush1.msra.mxu0 0.0
        %346 = vmatprep.subr.mxu0 0.0
        %347 = vmatpush1.msra.mxu0 0.0
        %348 = vmatprep.subr.mxu0 0.0
        %349 = vmatpush1.msra.mxu0 0.0
        %350 = vmatprep.subr.mxu0 0.0
        %351 = vmatpush1.msra.mxu0 0.0
        %352 = vmatprep.subr.mxu0 0.0
        %353 = vmatpush1.msra.mxu0 0.0
        %354 = vmatprep.subr.mxu0 0.0
        %355 = vmatpush1.msra.mxu0 0.0
        %356 = vmatprep.subr.mxu0 0.0
        %357 = vmatpush1.msra.mxu0 0.0
        %358 = vmatprep.subr.mxu0 0.0
        %359 = vmatpush1.msra.mxu0 0.0
        %360 = vmatprep.subr.mxu0 0.0
        %361 = vmatpush1.msra.mxu0 0.0
        %362 = vmatprep.subr.mxu0 0.0
        %363 = vmatpush1.msra.mxu0 0.0
        %364 = vmatprep.subr.mxu0 0.0
        %365 = vmatpush1.msra.mxu0 0.0
        %366 = vmatprep.subr.mxu0 0.0
        %367 = vmatpush1.msra.mxu0 0.0
        %368 = vmatprep.subr.mxu0 0.0
        %369 = vmatpush1.msra.mxu0 %v339
        %370 = vmatprep.subr.mxu0 0.0
        %371 = vmatpush1.msra.mxu0 %v338
        %372 = vmatprep.subr.mxu0 0.0
        %373 = vmatpush1.msra.mxu0 %v337
        %374 = vmatprep.subr.mxu0 0.0
        %375 = vmatpush1.msra.mxu0 %v336
        %376 = vmatprep.subr.mxu0 0.0
        %377 = vmatpush2.msra.mxu0 0.0
        %378 = vmatprep.subr.mxu0 0.0
        %379 = vmatpush2.msra.mxu0 0.0
        %380 = vmatprep.subr.mxu0 0.0
        %381 = vmatpush2.msra.mxu0 0.0
        %382 = vmatprep.subr.mxu0 0.0
        %383 = vmatpush2.msra.mxu0 0.0
        %384 = vmatprep.subr.mxu0 0.0
        %385 = vmatpush2.msra.mxu0 0.0
        %386 = vmatprep.subr.mxu0 0.0
        %387 = vmatpush2.msra.mxu0 0.0
        %388 = vmatprep.subr.mxu0 0.0
        %389 = vmatpush2.msra.mxu0 0.0
        %390 = vmatprep.subr.mxu0 0.0
        %391 = vmatpush2.msra.mxu0 0.0
        %392 = vmatprep.subr.mxu0 0.0
        %393 = vmatpush2.msra.mxu0 0.0
        %394 = vmatprep.subr.mxu0 0.0
        %395 = vmatpush2.msra.mxu0 0.0
        %396 = vmatprep.subr.mxu0 0.0
        %397 = vmatpush2.msra.mxu0 0.0
        %398 = vmatprep.subr.mxu0 0.0
        %399 = vmatpush2.msra.mxu0 0.0
        %400 = vmatprep.subr.mxu0 0.0
        %401 = vmatpush2.msra.mxu0 0.0
        %402 = vmatprep.subr.mxu0 0.0
        %403 = vmatpush2.msra.mxu0 0.0
        %404 = vmatprep.subr.mxu0 0.0
        %405 = vmatpush2.msra.mxu0 0.0
        %406 = vmatprep.subr.mxu0 0.0
        %407 = vmatpush2.msra.mxu0 0.0
        %408 = vmatprep.mubr.f32.mxu0 0.0
        %409 = vmatmul.mubr.f32.gmra.mxu0 %v342
        %v410 = vpop.f32.mrf.mxu0
        %v411 = vadd.f32 0.0, %v410
        %v412 = vpop.f32.mrf.mxu0
        %413 = vdwg.mxu0
        %v414 = vlaneseq
        %v415 = vshrl.u32 %v414, 7
        %v416 = vsub.s32 0, %v415
        %v417 = vrot.slane %v335, %v416
        %v418 = vadd.f32 %v411, %v417
        %v419 = vlaneseq
        %v420 = vshrl.u32 %v419, 7
        %v421 = vsub.s32 1, %v420
        %v422 = vrot.slane %v335, %v421
        %424 = vrot.lane.b32.xlu0 %v422, 32
        %v425 = vpop.permute.xlu0 %424
        %v427 = vadd.f32 %v411, %v425
        %v428 = vlaneseq
        %v429 = vshrl.u32 %v428, 7
        %v430 = vsub.s32 2, %v429
        %v431 = vrot.slane %v335, %v430
        %433 = vrot.lane.b32.xlu0 %v431, 64
        %v434 = vpop.permute.xlu0 %433
        %v436 = vadd.f32 %v411, %v434
        %v437 = vld [vmem:[%s333] sm:$0x1]
        %v439 = vlaneseq
        %v440 = vshrl.u32 %v439, 7
        %v441 = vsub.s32 0, %v440
        %v442 = vrot.slane %v437, %v441
        %445 = vrot.lane.b32.xlu0 %v427, 96
        %v446 = vpop.permute.xlu0 %445
        %vm447 = vcmask 64512
        %v449 = vsel %vm447, %v418, 0
        %v451 = vsel %vm447, %v446, 0
        %453 = vmatprep.subr.mxu0 0.0
        %454 = vmatpush1.xpose.msra.mxu0 0.0
        %455 = vmatprep.subr.mxu0 0.0
        %456 = vmatpush1.xpose.msra.mxu0 0.0
        %457 = vmatprep.subr.mxu0 0.0
        %458 = vmatpush1.xpose.msra.mxu0 0.0
        %459 = vmatprep.subr.mxu0 0.0
        %460 = vmatpush1.xpose.msra.mxu0 0.0
        %461 = vmatprep.subr.mxu0 0.0
        %462 = vmatpush1.xpose.msra.mxu0 0.0
        %463 = vmatprep.subr.mxu0 0.0
        %464 = vmatpush1.xpose.msra.mxu0 0.0
        %465 = vmatprep.subr.mxu0 0.0
        %466 = vmatpush1.xpose.msra.mxu0 0.0
        %467 = vmatprep.subr.mxu0 0.0
        %468 = vmatpush1.xpose.msra.mxu0 0.0
        %469 = vmatprep.subr.mxu0 0.0
        %470 = vmatpush1.xpose.msra.mxu0 0.0
        %471 = vmatprep.subr.mxu0 0.0
        %472 = vmatpush1.xpose.msra.mxu0 0.0
        %473 = vmatprep.subr.mxu0 0.0
        %474 = vmatpush1.xpose.msra.mxu0 0.0
        %475 = vmatprep.subr.mxu0 0.0
        %476 = vmatpush1.xpose.msra.mxu0 0.0
        %477 = vmatprep.subr.mxu0 0.0
        %478 = vmatpush1.xpose.msra.mxu0 0.0
        %479 = vmatprep.subr.mxu0 0.0
        %480 = vmatpush1.xpose.msra.mxu0 0.0
        %481 = vmatprep.subr.mxu0 0.0
        %482 = vmatpush1.xpose.msra.mxu0 0.0
        %483 = vmatprep.subr.mxu0 0.0
        %484 = vmatpush1.xpose.msra.mxu0 %v451
        %485 = vmatprep.subr.mxu0 0.0
        %486 = vmatpush2.xpose.msra.mxu0 0.0
        %487 = vmatprep.subr.mxu0 0.0
        %488 = vmatpush2.xpose.msra.mxu0 0.0
        %489 = vmatprep.subr.mxu0 0.0
        %490 = vmatpush2.xpose.msra.mxu0 0.0
        %491 = vmatprep.subr.mxu0 0.0
        %492 = vmatpush2.xpose.msra.mxu0 0.0
        %493 = vmatprep.subr.mxu0 0.0
        %494 = vmatpush2.xpose.msra.mxu0 0.0
        %495 = vmatprep.subr.mxu0 0.0
        %496 = vmatpush2.xpose.msra.mxu0 0.0
        %497 = vmatprep.subr.mxu0 0.0
        %498 = vmatpush2.xpose.msra.mxu0 0.0
        %499 = vmatprep.subr.mxu0 0.0
        %500 = vmatpush2.xpose.msra.mxu0 0.0
        %501 = vmatprep.subr.mxu0 0.0
        %502 = vmatpush2.xpose.msra.mxu0 0.0
        %503 = vmatprep.subr.mxu0 0.0
        %504 = vmatpush2.xpose.msra.mxu0 0.0
        %505 = vmatprep.subr.mxu0 0.0
        %506 = vmatpush2.xpose.msra.mxu0 0.0
        %507 = vmatprep.subr.mxu0 0.0
        %508 = vmatpush2.xpose.msra.mxu0 0.0
        %509 = vmatprep.subr.mxu0 0.0
        %510 = vmatpush2.xpose.msra.mxu0 0.0
        %511 = vmatprep.subr.mxu0 0.0
        %512 = vmatpush2.xpose.msra.mxu0 0.0
        %513 = vmatprep.subr.mxu0 0.0
        %514 = vmatpush2.xpose.msra.mxu0 0.0
        %515 = vmatprep.subr.mxu0 0.0
        %516 = vmatpush2.xpose.msra.mxu0 0.0
        %517 = vmatprep.mubr.f32.mxu0 0.0
        %518 = vmatmul.mubr.f32.gmra.mxu0 %v449
        %v519 = vpop.f32.mrf.mxu0
        %v520 = vadd.f32 %v442, %v519
        %v521 = vpop.f32.mrf.mxu0
        %522 = vdwg.mxu0
        %v523 = vsel %vm447, %v520, -inf
        %524 = vmax.xlane.f32.xlu0 %v523
        %v525 = vpop.xlane.xlu0 %524
        %v526 = vsub.f32 %v520, %v525
        %v527 = vmul.f32 %v526, 1.442695
        %v528 = vpow.pop %v527
        %v529 = vsel %vm447, %v528, 0.0
        %530 = vadd.xlane.f32.xlu0 %v529
        %v531 = vpop.xlane.xlu0 %530
        %v532 = vrcp.pop %v531
        %v533 = vmul.f32 %v528, %v532
        %535 = vrot.lane.b32.xlu0 %v436, 64
        %v536 = vpop.permute.xlu0 %535
        %v539 = vsel %vm447, %v533, 0
        %541 = vmatprep.subr.mxu0 0.0
        %542 = vmatpush1.msra.mxu0 0.0
        %543 = vmatprep.subr.mxu0 0.0
        %544 = vmatpush1.msra.mxu0 0.0
        %545 = vmatprep.subr.mxu0 0.0
        %546 = vmatpush1.msra.mxu0 0.0
        %547 = vmatprep.subr.mxu0 0.0
        %548 = vmatpush1.msra.mxu0 0.0
        %549 = vmatprep.subr.mxu0 0.0
        %550 = vmatpush1.msra.mxu0 0.0
        %551 = vmatprep.subr.mxu0 0.0
        %552 = vmatpush1.msra.mxu0 0.0
        %553 = vmatprep.subr.mxu0 0.0
        %554 = vmatpush1.msra.mxu0 0.0
        %555 = vmatprep.subr.mxu0 0.0
        %556 = vmatpush1.msra.mxu0 0.0
        %557 = vmatprep.subr.mxu0 0.0
        %558 = vmatpush1.msra.mxu0 0.0
        %559 = vmatprep.subr.mxu0 0.0
        %560 = vmatpush1.msra.mxu0 0.0
        %561 = vmatprep.subr.mxu0 0.0
        %562 = vmatpush1.msra.mxu0 0.0
        %563 = vmatprep.subr.mxu0 0.0
        %564 = vmatpush1.msra.mxu0 0.0
        %565 = vmatprep.subr.mxu0 0.0
        %566 = vmatpush1.msra.mxu0 0.0
        %567 = vmatprep.subr.mxu0 0.0
        %568 = vmatpush1.msra.mxu0 0.0
        %569 = vmatprep.subr.mxu0 0.0
        %570 = vmatpush1.msra.mxu0 0.0
        %571 = vmatprep.subr.mxu0 0.0
        %572 = vmatpush1.msra.mxu0 %v536
        %573 = vmatprep.subr.mxu0 0.0
        %574 = vmatpush2.msra.mxu0 0.0
        %575 = vmatprep.subr.mxu0 0.0
        %576 = vmatpush2.msra.mxu0 0.0
        %577 = vmatprep.subr.mxu0 0.0
        %578 = vmatpush2.msra.mxu0 0.0
        %579 = vmatprep.subr.mxu0 0.0
        %580 = vmatpush2.msra.mxu0 0.0
        %581 = vmatprep.subr.mxu0 0.0
        %582 = vmatpush2.msra.mxu0 0.0
        %583 = vmatprep.subr.mxu0 0.0
        %584 = vmatpush2.msra.mxu0 0.0
        %585 = vmatprep.subr.mxu0 0.0
        %586 = vmatpush2.msra.mxu0 0.0
        %587 = vmatprep.subr.mxu0 0.0
        %588 = vmatpush2.msra.mxu0 0.0
        %589 = vmatprep.subr.mxu0 0.0
        %590 = vmatpush2.msra.mxu0 0.0
        %591 = vmatprep.subr.mxu0 0.0
        %592 = vmatpush2.msra.mxu0 0.0
        %593 = vmatprep.subr.mxu0 0.0
        %594 = vmatpush2.msra.mxu0 0.0
        %595 = vmatprep.subr.mxu0 0.0
        %596 = vmatpush2.msra.mxu0 0.0
        %597 = vmatprep.subr.mxu0 0.0
        %598 = vmatpush2.msra.mxu0 0.0
        %599 = vmatprep.subr.mxu0 0.0
        %600 = vmatpush2.msra.mxu0 0.0
        %601 = vmatprep.subr.mxu0 0.0
        %602 = vmatpush2.msra.mxu0 0.0
        %603 = vmatprep.subr.mxu0 0.0
        %604 = vmatpush2.msra.mxu0 0.0
        %605 = vmatprep.mubr.f32.mxu0 0.0
        %606 = vmatmul.mubr.f32.gmra.mxu0 %v539
        %v607 = vpop.f32.mrf.mxu0
        %v608 = vadd.f32 0.0, %v607
        %v609 = vpop.f32.mrf.mxu0
        %610 = vdwg.mxu0
        %611 = vrot.lane.b32.xlu0 %v418, 120
        %v612 = vpop.permute.xlu0 %611
        %613 = vrot.lane.b32.xlu0 %v427, 88
        %v614 = vpop.permute.xlu0 %613
        %v615 = vsel %vm447, %v612, 0
        %v617 = vsel %vm447, %v614, 0
        %619 = vmatprep.subr.mxu0 0.0
        %620 = vmatpush1.xpose.msra.mxu0 0.0
        %621 = vmatprep.subr.mxu0 0.0
        %622 = vmatpush1.xpose.msra.mxu0 0.0
        %623 = vmatprep.subr.mxu0 0.0
        %624 = vmatpush1.xpose.msra.mxu0 0.0
        %625 = vmatprep.subr.mxu0 0.0
        %626 = vmatpush1.xpose.msra.mxu0 0.0
        %627 = vmatprep.subr.mxu0 0.0
        %628 = vmatpush1.xpose.msra.mxu0 0.0
        %629 = vmatprep.subr.mxu0 0.0
        %630 = vmatpush1.xpose.msra.mxu0 0.0
        %631 = vmatprep.subr.mxu0 0.0
        %632 = vmatpush1.xpose.msra.mxu0 0.0
        %633 = vmatprep.subr.mxu0 0.0
        %634 = vmatpush1.xpose.msra.mxu0 0.0
        %635 = vmatprep.subr.mxu0 0.0
        %636 = vmatpush1.xpose.msra.mxu0 0.0
        %637 = vmatprep.subr.mxu0 0.0
        %638 = vmatpush1.xpose.msra.mxu0 0.0
        %639 = vmatprep.subr.mxu0 0.0
        %640 = vmatpush1.xpose.msra.mxu0 0.0
        %641 = vmatprep.subr.mxu0 0.0
        %642 = vmatpush1.xpose.msra.mxu0 0.0
        %643 = vmatprep.subr.mxu0 0.0
        %644 = vmatpush1.xpose.msra.mxu0 0.0
        %645 = vmatprep.subr.mxu0 0.0
        %646 = vmatpush1.xpose.msra.mxu0 0.0
        %647 = vmatprep.subr.mxu0 0.0
        %648 = vmatpush1.xpose.msra.mxu0 0.0
        %649 = vmatprep.subr.mxu0 0.0
        %650 = vmatpush1.xpose.msra.mxu0 %v617
        %651 = vmatprep.subr.mxu0 0.0
        %652 = vmatpush2.xpose.msra.mxu0 0.0
        %653 = vmatprep.subr.mxu0 0.0
        %654 = vmatpush2.xpose.msra.mxu0 0.0
        %655 = vmatprep.subr.mxu0 0.0
        %656 = vmatpush2.xpose.msra.mxu0 0.0
        %657 = vmatprep.subr.mxu0 0.0
        %658 = vmatpush2.xpose.msra.mxu0 0.0
        %659 = vmatprep.subr.mxu0 0.0
        %660 = vmatpush2.xpose.msra.mxu0 0.0
        %661 = vmatprep.subr.mxu0 0.0
        %662 = vmatpush2.xpose.msra.mxu0 0.0
        %663 = vmatprep.subr.mxu0 0.0
        %664 = vmatpush2.xpose.msra.mxu0 0.0
        %665 = vmatprep.subr.mxu0 0.0
        %666 = vmatpush2.xpose.msra.mxu0 0.0
        %667 = vmatprep.subr.mxu0 0.0
        %668 = vmatpush2.xpose.msra.mxu0 0.0
        %669 = vmatprep.subr.mxu0 0.0
        %670 = vmatpush2.xpose.msra.mxu0 0.0
        %671 = vmatprep.subr.mxu0 0.0
        %672 = vmatpush2.xpose.msra.mxu0 0.0
        %673 = vmatprep.subr.mxu0 0.0
        %674 = vmatpush2.xpose.msra.mxu0 0.0
        %675 = vmatprep.subr.mxu0 0.0
        %676 = vmatpush2.xpose.msra.mxu0 0.0
        %677 = vmatprep.subr.mxu0 0.0
        %678 = vmatpush2.xpose.msra.mxu0 0.0
        %679 = vmatprep.subr.mxu0 0.0
        %680 = vmatpush2.xpose.msra.mxu0 0.0
        %681 = vmatprep.subr.mxu0 0.0
        %682 = vmatpush2.xpose.msra.mxu0 0.0
        %683 = vmatprep.mubr.f32.mxu0 0.0
        %684 = vmatmul.mubr.f32.gmra.mxu0 %v615
        %v685 = vpop.f32.mrf.mxu0
        %v686 = vadd.f32 %v442, %v685
        %v687 = vpop.f32.mrf.mxu0
        %688 = vdwg.mxu0
        %v689 = vsel %vm447, %v686, -inf
        %690 = vmax.xlane.f32.xlu0 %v689
        %v691 = vpop.xlane.xlu0 %690
        %v692 = vsub.f32 %v686, %v691
        %v693 = vmul.f32 %v692, 1.442695
        %v694 = vpow.pop %v693
        %v695 = vsel %vm447, %v694, 0.0
        %696 = vadd.xlane.f32.xlu0 %v695
        %v697 = vpop.xlane.xlu0 %696
        %v698 = vrcp.pop %v697
        %v699 = vmul.f32 %v694, %v698
        %700 = vrot.lane.b32.xlu0 %v436, 56
        %v701 = vpop.permute.xlu0 %700
        %v704 = vsel %vm447, %v699, 0
        %706 = vmatprep.subr.mxu0 0.0
        %707 = vmatpush1.msra.mxu0 0.0
        %708 = vmatprep.subr.mxu0 0.0
        %709 = vmatpush1.msra.mxu0 0.0
        %710 = vmatprep.subr.mxu0 0.0
        %711 = vmatpush1.msra.mxu0 0.0
        %712 = vmatprep.subr.mxu0 0.0
        %713 = vmatpush1.msra.mxu0 0.0
        %714 = vmatprep.subr.mxu0 0.0
        %715 = vmatpush1.msra.mxu0 0.0
        %716 = vmatprep.subr.mxu0 0.0
        %717 = vmatpush1.msra.mxu0 0.0
        %718 = vmatprep.subr.mxu0 0.0
        %719 = vmatpush1.msra.mxu0 0.0
        %720 = vmatprep.subr.mxu0 0.0
        %721 = vmatpush1.msra.mxu0 0.0
        %722 = vmatprep.subr.mxu0 0.0
        %723 = vmatpush1.msra.mxu0 0.0
        %724 = vmatprep.subr.mxu0 0.0
        %725 = vmatpush1.msra.mxu0 0.0
        %726 = vmatprep.subr.mxu0 0.0
        %727 = vmatpush1.msra.mxu0 0.0
        %728 = vmatprep.subr.mxu0 0.0
        %729 = vmatpush1.msra.mxu0 0.0
        %730 = vmatprep.subr.mxu0 0.0
        %731 = vmatpush1.msra.mxu0 0.0
        %732 = vmatprep.subr.mxu0 0.0
        %733 = vmatpush1.msra.mxu0 0.0
        %734 = vmatprep.subr.mxu0 0.0
        %735 = vmatpush1.msra.mxu0 0.0
        %736 = vmatprep.subr.mxu0 0.0
        %737 = vmatpush1.msra.mxu0 %v701
        %738 = vmatprep.subr.mxu0 0.0
        %739 = vmatpush2.msra.mxu0 0.0
        %740 = vmatprep.subr.mxu0 0.0
        %741 = vmatpush2.msra.mxu0 0.0
        %742 = vmatprep.subr.mxu0 0.0
        %743 = vmatpush2.msra.mxu0 0.0
        %744 = vmatprep.subr.mxu0 0.0
        %745 = vmatpush2.msra.mxu0 0.0
        %746 = vmatprep.subr.mxu0 0.0
        %747 = vmatpush2.msra.mxu0 0.0
        %748 = vmatprep.subr.mxu0 0.0
        %749 = vmatpush2.msra.mxu0 0.0
        %750 = vmatprep.subr.mxu0 0.0
        %751 = vmatpush2.msra.mxu0 0.0
        %752 = vmatprep.subr.mxu0 0.0
        %753 = vmatpush2.msra.mxu0 0.0
        %754 = vmatprep.subr.mxu0 0.0
        %755 = vmatpush2.msra.mxu0 0.0
        %756 = vmatprep.subr.mxu0 0.0
        %757 = vmatpush2.msra.mxu0 0.0
        %758 = vmatprep.subr.mxu0 0.0
        %759 = vmatpush2.msra.mxu0 0.0
        %760 = vmatprep.subr.mxu0 0.0
        %761 = vmatpush2.msra.mxu0 0.0
        %762 = vmatprep.subr.mxu0 0.0
        %763 = vmatpush2.msra.mxu0 0.0
        %764 = vmatprep.subr.mxu0 0.0
        %765 = vmatpush2.msra.mxu0 0.0
        %766 = vmatprep.subr.mxu0 0.0
        %767 = vmatpush2.msra.mxu0 0.0
        %768 = vmatprep.subr.mxu0 0.0
        %769 = vmatpush2.msra.mxu0 0.0
        %770 = vmatprep.mubr.f32.mxu0 0.0
        %771 = vmatmul.mubr.f32.gmra.mxu0 %v704
        %v772 = vpop.f32.mrf.mxu0
        %v773 = vadd.f32 0.0, %v772
        %v774 = vpop.f32.mrf.mxu0
        %775 = vdwg.mxu0
        %776 = vrot.lane.b32.xlu0 %v418, 112
        %v777 = vpop.permute.xlu0 %776
        %778 = vrot.lane.b32.xlu0 %v427, 80
        %v779 = vpop.permute.xlu0 %778
        %v780 = vsel %vm447, %v777, 0
        %v782 = vsel %vm447, %v779, 0
        %784 = vmatprep.subr.mxu0 0.0
        %785 = vmatpush1.xpose.msra.mxu0 0.0
        %786 = vmatprep.subr.mxu0 0.0
        %787 = vmatpush1.xpose.msra.mxu0 0.0
        %788 = vmatprep.subr.mxu0 0.0
        %789 = vmatpush1.xpose.msra.mxu0 0.0
        %790 = vmatprep.subr.mxu0 0.0
        %791 = vmatpush1.xpose.msra.mxu0 0.0
        %792 = vmatprep.subr.mxu0 0.0
        %793 = vmatpush1.xpose.msra.mxu0 0.0
        %794 = vmatprep.subr.mxu0 0.0
        %795 = vmatpush1.xpose.msra.mxu0 0.0
        %796 = vmatprep.subr.mxu0 0.0
        %797 = vmatpush1.xpose.msra.mxu0 0.0
        %798 = vmatprep.subr.mxu0 0.0
        %799 = vmatpush1.xpose.msra.mxu0 0.0
        %800 = vmatprep.subr.mxu0 0.0
        %801 = vmatpush1.xpose.msra.mxu0 0.0
        %802 = vmatprep.subr.mxu0 0.0
        %803 = vmatpush1.xpose.msra.mxu0 0.0
        %804 = vmatprep.subr.mxu0 0.0
        %805 = vmatpush1.xpose.msra.mxu0 0.0
        %806 = vmatprep.subr.mxu0 0.0
        %807 = vmatpush1.xpose.msra.mxu0 0.0
        %808 = vmatprep.subr.mxu0 0.0
        %809 = vmatpush1.xpose.msra.mxu0 0.0
        %810 = vmatprep.subr.mxu0 0.0
        %811 = vmatpush1.xpose.msra.mxu0 0.0
        %812 = vmatprep.subr.mxu0 0.0
        %813 = vmatpush1.xpose.msra.mxu0 0.0
        %814 = vmatprep.subr.mxu0 0.0
        %815 = vmatpush1.xpose.msra.mxu0 %v782
        %816 = vmatprep.subr.mxu0 0.0
        %817 = vmatpush2.xpose.msra.mxu0 0.0
        %818 = vmatprep.subr.mxu0 0.0
        %819 = vmatpush2.xpose.msra.mxu0 0.0
        %820 = vmatprep.subr.mxu0 0.0
        %821 = vmatpush2.xpose.msra.mxu0 0.0
        %822 = vmatprep.subr.mxu0 0.0
        %823 = vmatpush2.xpose.msra.mxu0 0.0
        %824 = vmatprep.subr.mxu0 0.0
        %825 = vmatpush2.xpose.msra.mxu0 0.0
        %826 = vmatprep.subr.mxu0 0.0
        %827 = vmatpush2.xpose.msra.mxu0 0.0
        %828 = vmatprep.subr.mxu0 0.0
        %829 = vmatpush2.xpose.msra.mxu0 0.0
        %830 = vmatprep.subr.mxu0 0.0
        %831 = vmatpush2.xpose.msra.mxu0 0.0
        %832 = vmatprep.subr.mxu0 0.0
        %833 = vmatpush2.xpose.msra.mxu0 0.0
        %834 = vmatprep.subr.mxu0 0.0
        %835 = vmatpush2.xpose.msra.mxu0 0.0
        %836 = vmatprep.subr.mxu0 0.0
        %837 = vmatpush2.xpose.msra.mxu0 0.0
        %838 = vmatprep.subr.mxu0 0.0
        %839 = vmatpush2.xpose.msra.mxu0 0.0
        %840 = vmatprep.subr.mxu0 0.0
        %841 = vmatpush2.xpose.msra.mxu0 0.0
        %842 = vmatprep.subr.mxu0 0.0
        %843 = vmatpush2.xpose.msra.mxu0 0.0
        %844 = vmatprep.subr.mxu0 0.0
        %845 = vmatpush2.xpose.msra.mxu0 0.0
        %846 = vmatprep.subr.mxu0 0.0
        %847 = vmatpush2.xpose.msra.mxu0 0.0
        %848 = vmatprep.mubr.f32.mxu0 0.0
        %849 = vmatmul.mubr.f32.gmra.mxu0 %v780
        %v850 = vpop.f32.mrf.mxu0
        %v851 = vadd.f32 %v442, %v850
        %v852 = vpop.f32.mrf.mxu0
        %853 = vdwg.mxu0
        %v854 = vsel %vm447, %v851, -inf
        %855 = vmax.xlane.f32.xlu0 %v854
        %v856 = vpop.xlane.xlu0 %855
        %v857 = vsub.f32 %v851, %v856
        %v858 = vmul.f32 %v857, 1.442695
        %v859 = vpow.pop %v858
        %v860 = vsel %vm447, %v859, 0.0
        %861 = vadd.xlane.f32.xlu0 %v860
        %v862 = vpop.xlane.xlu0 %861
        %v863 = vrcp.pop %v862
        %v864 = vmul.f32 %v859, %v863
        %865 = vrot.lane.b32.xlu0 %v436, 48
        %v866 = vpop.permute.xlu0 %865
        %v869 = vsel %vm447, %v864, 0
        %871 = vmatprep.subr.mxu0 0.0
        %872 = vmatpush1.msra.mxu0 0.0
        %873 = vmatprep.subr.mxu0 0.0
        %874 = vmatpush1.msra.mxu0 0.0
        %875 = vmatprep.subr.mxu0 0.0
        %876 = vmatpush1.msra.mxu0 0.0
        %877 = vmatprep.subr.mxu0 0.0
        %878 = vmatpush1.msra.mxu0 0.0
        %879 = vmatprep.subr.mxu0 0.0
        %880 = vmatpush1.msra.mxu0 0.0
        %881 = vmatprep.subr.mxu0 0.0
        %882 = vmatpush1.msra.mxu0 0.0
        %883 = vmatprep.subr.mxu0 0.0
        %884 = vmatpush1.msra.mxu0 0.0
        %885 = vmatprep.subr.mxu0 0.0
        %886 = vmatpush1.msra.mxu0 0.0
        %887 = vmatprep.subr.mxu0 0.0
        %888 = vmatpush1.msra.mxu0 0.0
        %889 = vmatprep.subr.mxu0 0.0
        %890 = vmatpush1.msra.mxu0 0.0
        %891 = vmatprep.subr.mxu0 0.0
        %892 = vmatpush1.msra.mxu0 0.0
        %893 = vmatprep.subr.mxu0 0.0
        %894 = vmatpush1.msra.mxu0 0.0
        %895 = vmatprep.subr.mxu0 0.0
        %896 = vmatpush1.msra.mxu0 0.0
        %897 = vmatprep.subr.mxu0 0.0
        %898 = vmatpush1.msra.mxu0 0.0
        %899 = vmatprep.subr.mxu0 0.0
        %900 = vmatpush1.msra.mxu0 0.0
        %901 = vmatprep.subr.mxu0 0.0
        %902 = vmatpush1.msra.mxu0 %v866
        %903 = vmatprep.subr.mxu0 0.0
        %904 = vmatpush2.msra.mxu0 0.0
        %905 = vmatprep.subr.mxu0 0.0
        %906 = vmatpush2.msra.mxu0 0.0
        %907 = vmatprep.subr.mxu0 0.0
        %908 = vmatpush2.msra.mxu0 0.0
        %909 = vmatprep.subr.mxu0 0.0
        %910 = vmatpush2.msra.mxu0 0.0
        %911 = vmatprep.subr.mxu0 0.0
        %912 = vmatpush2.msra.mxu0 0.0
        %913 = vmatprep.subr.mxu0 0.0
        %914 = vmatpush2.msra.mxu0 0.0
        %915 = vmatprep.subr.mxu0 0.0
        %916 = vmatpush2.msra.mxu0 0.0
        %917 = vmatprep.subr.mxu0 0.0
        %918 = vmatpush2.msra.mxu0 0.0
        %919 = vmatprep.subr.mxu0 0.0
        %920 = vmatpush2.msra.mxu0 0.0
        %921 = vmatprep.subr.mxu0 0.0
        %922 = vmatpush2.msra.mxu0 0.0
        %923 = vmatprep.subr.mxu0 0.0
        %924 = vmatpush2.msra.mxu0 0.0
        %925 = vmatprep.subr.mxu0 0.0
        %926 = vmatpush2.msra.mxu0 0.0
        %927 = vmatprep.subr.mxu0 0.0
        %928 = vmatpush2.msra.mxu0 0.0
        %929 = vmatprep.subr.mxu0 0.0
        %930 = vmatpush2.msra.mxu0 0.0
        %931 = vmatprep.subr.mxu0 0.0
        %932 = vmatpush2.msra.mxu0 0.0
        %933 = vmatprep.subr.mxu0 0.0
        %934 = vmatpush2.msra.mxu0 0.0
        %935 = vmatprep.mubr.f32.mxu0 0.0
        %936 = vmatmul.mubr.f32.gmra.mxu0 %v869
        %v937 = vpop.f32.mrf.mxu0
        %v938 = vadd.f32 0.0, %v937
        %v939 = vpop.f32.mrf.mxu0
        %940 = vdwg.mxu0
        %941 = vrot.lane.b32.xlu0 %v418, 104
        %v942 = vpop.permute.xlu0 %941
        %943 = vrot.lane.b32.xlu0 %v427, 72
        %v944 = vpop.permute.xlu0 %943
        %v945 = vsel %vm447, %v942, 0
        %v947 = vsel %vm447, %v944, 0
        %949 = vmatprep.subr.mxu0 0.0
        %950 = vmatpush1.xpose.msra.mxu0 0.0
        %951 = vmatprep.subr.mxu0 0.0
        %952 = vmatpush1.xpose.msra.mxu0 0.0
        %953 = vmatprep.subr.mxu0 0.0
        %954 = vmatpush1.xpose.msra.mxu0 0.0
        %955 = vmatprep.subr.mxu0 0.0
        %956 = vmatpush1.xpose.msra.mxu0 0.0
        %957 = vmatprep.subr.mxu0 0.0
        %958 = vmatpush1.xpose.msra.mxu0 0.0
        %959 = vmatprep.subr.mxu0 0.0
        %960 = vmatpush1.xpose.msra.mxu0 0.0
        %961 = vmatprep.subr.mxu0 0.0
        %962 = vmatpush1.xpose.msra.mxu0 0.0
        %963 = vmatprep.subr.mxu0 0.0
        %964 = vmatpush1.xpose.msra.mxu0 0.0
        %965 = vmatprep.subr.mxu0 0.0
        %966 = vmatpush1.xpose.msra.mxu0 0.0
        %967 = vmatprep.subr.mxu0 0.0
        %968 = vmatpush1.xpose.msra.mxu0 0.0
        %969 = vmatprep.subr.mxu0 0.0
        %970 = vmatpush1.xpose.msra.mxu0 0.0
        %971 = vmatprep.subr.mxu0 0.0
        %972 = vmatpush1.xpose.msra.mxu0 0.0
        %973 = vmatprep.subr.mxu0 0.0
        %974 = vmatpush1.xpose.msra.mxu0 0.0
        %975 = vmatprep.subr.mxu0 0.0
        %976 = vmatpush1.xpose.msra.mxu0 0.0
        %977 = vmatprep.subr.mxu0 0.0
        %978 = vmatpush1.xpose.msra.mxu0 0.0
        %979 = vmatprep.subr.mxu0 0.0
        %980 = vmatpush1.xpose.msra.mxu0 %v947
        %981 = vmatprep.subr.mxu0 0.0
        %982 = vmatpush2.xpose.msra.mxu0 0.0
        %983 = vmatprep.subr.mxu0 0.0
        %984 = vmatpush2.xpose.msra.mxu0 0.0
        %985 = vmatprep.subr.mxu0 0.0
        %986 = vmatpush2.xpose.msra.mxu0 0.0
        %987 = vmatprep.subr.mxu0 0.0
        %988 = vmatpush2.xpose.msra.mxu0 0.0
        %989 = vmatprep.subr.mxu0 0.0
        %990 = vmatpush2.xpose.msra.mxu0 0.0
        %991 = vmatprep.subr.mxu0 0.0
        %992 = vmatpush2.xpose.msra.mxu0 0.0
        %993 = vmatprep.subr.mxu0 0.0
        %994 = vmatpush2.xpose.msra.mxu0 0.0
        %995 = vmatprep.subr.mxu0 0.0
        %996 = vmatpush2.xpose.msra.mxu0 0.0
        %997 = vmatprep.subr.mxu0 0.0
        %998 = vmatpush2.xpose.msra.mxu0 0.0
        %999 = vmatprep.subr.mxu0 0.0
        %1000 = vmatpush2.xpose.msra.mxu0 0.0
        %1001 = vmatprep.subr.mxu0 0.0
        %1002 = vmatpush2.xpose.msra.mxu0 0.0
        %1003 = vmatprep.subr.mxu0 0.0
        %1004 = vmatpush2.xpose.msra.mxu0 0.0
        %1005 = vmatprep.subr.mxu0 0.0
        %1006 = vmatpush2.xpose.msra.mxu0 0.0
        %1007 = vmatprep.subr.mxu0 0.0
        %1008 = vmatpush2.xpose.msra.mxu0 0.0
        %1009 = vmatprep.subr.mxu0 0.0
        %1010 = vmatpush2.xpose.msra.mxu0 0.0
        %1011 = vmatprep.subr.mxu0 0.0
        %1012 = vmatpush2.xpose.msra.mxu0 0.0
        %1013 = vmatprep.mubr.f32.mxu0 0.0
        %1014 = vmatmul.mubr.f32.gmra.mxu0 %v945
        %v1015 = vpop.f32.mrf.mxu0
        %v1016 = vadd.f32 %v442, %v1015
        %v1017 = vpop.f32.mrf.mxu0
        %1018 = vdwg.mxu0
        %v1019 = vsel %vm447, %v1016, -inf
        %1020 = vmax.xlane.f32.xlu0 %v1019
        %v1021 = vpop.xlane.xlu0 %1020
        %v1022 = vsub.f32 %v1016, %v1021
        %v1023 = vmul.f32 %v1022, 1.442695
        %v1024 = vpow.pop %v1023
        %v1025 = vsel %vm447, %v1024, 0.0
        %1026 = vadd.xlane.f32.xlu0 %v1025
        %v1027 = vpop.xlane.xlu0 %1026
        %v1028 = vrcp.pop %v1027
        %v1029 = vmul.f32 %v1024, %v1028
        %1030 = vrot.lane.b32.xlu0 %v436, 40
        %v1031 = vpop.permute.xlu0 %1030
        %v1034 = vsel %vm447, %v1029, 0
        %1036 = vmatprep.subr.mxu0 0.0
        %1037 = vmatpush1.msra.mxu0 0.0
        %1038 = vmatprep.subr.mxu0 0.0
        %1039 = vmatpush1.msra.mxu0 0.0
        %1040 = vmatprep.subr.mxu0 0.0
        %1041 = vmatpush1.msra.mxu0 0.0
        %1042 = vmatprep.subr.mxu0 0.0
        %1043 = vmatpush1.msra.mxu0 0.0
        %1044 = vmatprep.subr.mxu0 0.0
        %1045 = vmatpush1.msra.mxu0 0.0
        %1046 = vmatprep.subr.mxu0 0.0
        %1047 = vmatpush1.msra.mxu0 0.0
        %1048 = vmatprep.subr.mxu0 0.0
        %1049 = vmatpush1.msra.mxu0 0.0
        %1050 = vmatprep.subr.mxu0 0.0
        %1051 = vmatpush1.msra.mxu0 0.0
        %1052 = vmatprep.subr.mxu0 0.0
        %1053 = vmatpush1.msra.mxu0 0.0
        %1054 = vmatprep.subr.mxu0 0.0
        %1055 = vmatpush1.msra.mxu0 0.0
        %1056 = vmatprep.subr.mxu0 0.0
        %1057 = vmatpush1.msra.mxu0 0.0
        %1058 = vmatprep.subr.mxu0 0.0
        %1059 = vmatpush1.msra.mxu0 0.0
        %1060 = vmatprep.subr.mxu0 0.0
        %1061 = vmatpush1.msra.mxu0 0.0
        %1062 = vmatprep.subr.mxu0 0.0
        %1063 = vmatpush1.msra.mxu0 0.0
        %1064 = vmatprep.subr.mxu0 0.0
        %1065 = vmatpush1.msra.mxu0 0.0
        %1066 = vmatprep.subr.mxu0 0.0
        %1067 = vmatpush1.msra.mxu0 %v1031
        %1068 = vmatprep.subr.mxu0 0.0
        %1069 = vmatpush2.msra.mxu0 0.0
        %1070 = vmatprep.subr.mxu0 0.0
        %1071 = vmatpush2.msra.mxu0 0.0
        %1072 = vmatprep.subr.mxu0 0.0
        %1073 = vmatpush2.msra.mxu0 0.0
        %1074 = vmatprep.subr.mxu0 0.0
        %1075 = vmatpush2.msra.mxu0 0.0
        %1076 = vmatprep.subr.mxu0 0.0
        %1077 = vmatpush2.msra.mxu0 0.0
        %1078 = vmatprep.subr.mxu0 0.0
        %1079 = vmatpush2.msra.mxu0 0.0
        %1080 = vmatprep.subr.mxu0 0.0
        %1081 = vmatpush2.msra.mxu0 0.0
        %1082 = vmatprep.subr.mxu0 0.0
        %1083 = vmatpush2.msra.mxu0 0.0
        %1084 = vmatprep.subr.mxu0 0.0
        %1085 = vmatpush2.msra.mxu0 0.0
        %1086 = vmatprep.subr.mxu0 0.0
        %1087 = vmatpush2.msra.mxu0 0.0
        %1088 = vmatprep.subr.mxu0 0.0
        %1089 = vmatpush2.msra.mxu0 0.0
        %1090 = vmatprep.subr.mxu0 0.0
        %1091 = vmatpush2.msra.mxu0 0.0
        %1092 = vmatprep.subr.mxu0 0.0
        %1093 = vmatpush2.msra.mxu0 0.0
        %1094 = vmatprep.subr.mxu0 0.0
        %1095 = vmatpush2.msra.mxu0 0.0
        %1096 = vmatprep.subr.mxu0 0.0
        %1097 = vmatpush2.msra.mxu0 0.0
        %1098 = vmatprep.subr.mxu0 0.0
        %1099 = vmatpush2.msra.mxu0 0.0
        %1100 = vmatprep.mubr.f32.mxu0 0.0
        %1101 = vmatmul.mubr.f32.gmra.mxu0 %v1034
        %v1102 = vpop.f32.mrf.mxu0
        %v1103 = vadd.f32 0.0, %v1102
        %v1104 = vpop.f32.mrf.mxu0
        %1105 = vdwg.mxu0
        %1107 = vrot.lane.b32.xlu0 %v773, 8
        %v1108 = vpop.permute.xlu0 %1107
        %1111 = vrot.lane.b32.xlu0 %v938, 16
        %v1112 = vpop.permute.xlu0 %1111
        %1115 = vrot.lane.b32.xlu0 %v1103, 24
        %v1116 = vpop.permute.xlu0 %1115
        %v1118 = vsel %vm447, %v608, %v1108
        %vm1119 = vcmask 130048
        %v1120 = vsel %vm1119, %v1118, %v1112
        %vm1121 = vcmask 195584
        %v1122 = vsel %vm1121, %v1120, %v1116
        %v1123 = vld [vmem:[#allocation7] sm:$0xff]
        %v1124 = vld [vmem:[#allocation7 + $0x8] sm:$0xff]
        %v1125 = vld [vmem:[#allocation7 + $0x10] sm:$0xff]
        %v1126 = vld [vmem:[#allocation7 + $0x18] sm:$0xff]
        %v1127 = vlaneseq
        %v1128 = vshrl.u32 %v1127, 7
        %v1129 = vsub.s32 3, %v1128
        %v1130 = vrot.slane %v335, %v1129
        %v1132 = vsel %vm340, %v1122, 0
        %1134 = vmatprep.subr.mxu0 0.0
        %1135 = vmatpush1.msra.mxu0 0.0
        %1136 = vmatprep.subr.mxu0 0.0
        %1137 = vmatpush1.msra.mxu0 0.0
        %1138 = vmatprep.subr.mxu0 0.0
        %1139 = vmatpush1.msra.mxu0 0.0
        %1140 = vmatprep.subr.mxu0 0.0
        %1141 = vmatpush1.msra.mxu0 0.0
        %1142 = vmatprep.subr.mxu0 0.0
        %1143 = vmatpush1.msra.mxu0 0.0
        %1144 = vmatprep.subr.mxu0 0.0
        %1145 = vmatpush1.msra.mxu0 0.0
        %1146 = vmatprep.subr.mxu0 0.0
        %1147 = vmatpush1.msra.mxu0 0.0
        %1148 = vmatprep.subr.mxu0 0.0
        %1149 = vmatpush1.msra.mxu0 0.0
        %1150 = vmatprep.subr.mxu0 0.0
        %1151 = vmatpush1.msra.mxu0 0.0
        %1152 = vmatprep.subr.mxu0 0.0
        %1153 = vmatpush1.msra.mxu0 0.0
        %1154 = vmatprep.subr.mxu0 0.0
        %1155 = vmatpush1.msra.mxu0 0.0
        %1156 = vmatprep.subr.mxu0 0.0
        %1157 = vmatpush1.msra.mxu0 0.0
        %1158 = vmatprep.subr.mxu0 0.0
        %1159 = vmatpush1.msra.mxu0 %v1126
        %1160 = vmatprep.subr.mxu0 0.0
        %1161 = vmatpush1.msra.mxu0 %v1125
        %1162 = vmatprep.subr.mxu0 0.0
        %1163 = vmatpush1.msra.mxu0 %v1124
        %1164 = vmatprep.subr.mxu0 0.0
        %1165 = vmatpush1.msra.mxu0 %v1123
        %1166 = vmatprep.subr.mxu0 0.0
        %1167 = vmatpush2.msra.mxu0 0.0
        %1168 = vmatprep.subr.mxu0 0.0
        %1169 = vmatpush2.msra.mxu0 0.0
        %1170 = vmatprep.subr.mxu0 0.0
        %1171 = vmatpush2.msra.mxu0 0.0
        %1172 = vmatprep.subr.mxu0 0.0
        %1173 = vmatpush2.msra.mxu0 0.0
        %1174 = vmatprep.subr.mxu0 0.0
        %1175 = vmatpush2.msra.mxu0 0.0
        %1176 = vmatprep.subr.mxu0 0.0
        %1177 = vmatpush2.msra.mxu0 0.0
        %1178 = vmatprep.subr.mxu0 0.0
        %1179 = vmatpush2.msra.mxu0 0.0
        %1180 = vmatprep.subr.mxu0 0.0
        %1181 = vmatpush2.msra.mxu0 0.0
        %1182 = vmatprep.subr.mxu0 0.0
        %1183 = vmatpush2.msra.mxu0 0.0
        %1184 = vmatprep.subr.mxu0 0.0
        %1185 = vmatpush2.msra.mxu0 0.0
        %1186 = vmatprep.subr.mxu0 0.0
        %1187 = vmatpush2.msra.mxu0 0.0
        %1188 = vmatprep.subr.mxu0 0.0
        %1189 = vmatpush2.msra.mxu0 0.0
        %1190 = vmatprep.subr.mxu0 0.0
        %1191 = vmatpush2.msra.mxu0 0.0
        %1192 = vmatprep.subr.mxu0 0.0
        %1193 = vmatpush2.msra.mxu0 0.0
        %1194 = vmatprep.subr.mxu0 0.0
        %1195 = vmatpush2.msra.mxu0 0.0
        %1196 = vmatprep.subr.mxu0 0.0
        %1197 = vmatpush2.msra.mxu0 0.0
        %1198 = vmatprep.mubr.f32.mxu0 0.0
        %1199 = vmatmul.mubr.f32.gmra.mxu0 %v1132
        %v1200 = vpop.f32.mrf.mxu0
        %v1201 = vadd.f32 %v1130, %v1200
        %v1202 = vpop.f32.mrf.mxu0
        %1203 = vdwg.mxu0
        %v1204 = vadd.f32 %v1201, %v334
        %v1205 = vsel %vm340, %v1204, 0.0
        %1206 = vadd.xlane.f32.xlu0 %v1205
        %v1207 = vpop.xlane.xlu0 %1206
        %v1208 = vrcp.pop 32.0
        %v1209 = vmul.f32 %v1207, %v1208
        %v1210 = vsub.f32 %v1204, %v1209
        %v1211 = vmul.f32 %v1210, %v1210
        %v1212 = vsel %vm340, %v1211, 0.0
        %1213 = vadd.xlane.f32.xlu0 %v1212
        %v1214 = vpop.xlane.xlu0 %1213
        %v1215 = vmul.f32 %v1214, %v1208
        %v1216 = vadd.f32 %v1215, 1e-12
        %v1217 = vrsqrt.pop %v1216
        %v1218 = vmul.f32 %v1210, %v1217
        %v1219 = vlaneseq
        %v1220 = vshrl.u32 %v1219, 7
        %v1221 = vsub.s32 4, %v1220
        %v1222 = vrot.slane %v335, %v1221
        %v1223 = vmul.f32 %v1218, %v1222
        %v1224 = vlaneseq
        %v1225 = vshrl.u32 %v1224, 7
        %v1226 = vsub.s32 5, %v1225
        %v1227 = vrot.slane %v335, %v1226
        %v1228 = vadd.f32 %v1223, %v1227
        %1229 = vst.msk [vmem:[%s323] sm:$0xff] %vm340, %v1228
        %1230 = vst.msk [vmem:[%s330] sm:$0xff] %vm447, %v533
        %1231 = vst.msk [vmem:[%s330 + $0x8] sm:$0xff] %vm447, %v699
        %1232 = vst.msk [vmem:[%s330 + $0x10] sm:$0xff] %vm447, %v864
        %1233 = vst.msk [vmem:[%s330 + $0x18] sm:$0xff] %vm447, %v1029
        %s1234 = sand.u32 %s152, 1
        %s1235 = scalar_lea.sflag [#allocation4], %s1234
        %s1236 = sand.u32 %s152, 1
        %s1237 = smul.addr %s1236, 8
        %s1238 = scalar_lea.vmem [#allocation10], %s1237
        %s1239 = sand.u32 %s178, 1
        %s1240 = scalar_lea.sflag [#allocation12], %s1239
        %s1241 = sand.u32 %s178, 1
        %s1242 = smul.addr %s1241, 32
        %s1243 = scalar_lea.vmem [#allocation11], %s1242
        // Predicated region
        $region57: #{tpu_custom_call.1} parent=39 // pred_check
          %p1244 = pneg %p162
        $region58: #{tpu_custom_call.1} parent=39 // pred_check_branch
          %1246 = sbr.rel (%p1244) target = $region60
        $region59: #{tpu_custom_call.1} parent=39 // pred_region
          %s1248 = ssub.s32 128, 128
          %1249 = vsyncadd %s1235, %s1248
          %s1250 = smul.addr %s29, 128
          %s1251 = scalar_lea.hbm %s5, %s1250
          %s1253 = sshll.u32 %s1238, 4
          %s1254 = int_to_ptr.vmem [resolvable:$true] %s1253
          %1256 = dma.vmem_to_hbm [thread:$0]  %s1254, 128, %s1251, %s1235
        $region60: #{tpu_custom_call.1} parent=39 // pred_fallthru
          _
        // Predicated region
        $region61: #{tpu_custom_call.1} parent=39 // pred_check
          %p1257 = pneg %p188
        $region62: #{tpu_custom_call.1} parent=39 // pred_check_branch
          %1259 = sbr.rel (%p1257) target = $region64
        $region63: #{tpu_custom_call.1} parent=39 // pred_region
          %s1261 = ssub.s32 512, 512
          %1262 = vsyncadd %s1240, %s1261
          %s1263 = smul.addr %s29, 4
          %s1264 = smul.addr %s1263, 128
          %s1265 = scalar_lea.hbm %s6, %s1264
          %s1266 = sshll.u32 %s1243, 4
          %s1267 = int_to_ptr.vmem [resolvable:$true] %s1266
          %1272 = dma.vmem_to_hbm [thread:$0]  %s1267, 512, %s1265, %s1240, 128, 128, 8
        $region64: #{tpu_custom_call.1} parent=39 // pred_fallthru
          _
      $region40: #{tpu_custom_call.1} parent=5 // pred_fallthru
        _
      %p1273 = scmp.le.s32.totalorder 2, %s24
      // Predicated region
      $region65: #{tpu_custom_call.1} parent=5 // pred_check
        %p1274 = pneg %p1273
      $region66: #{tpu_custom_call.1} parent=5 // pred_check_branch
        %1276 = sbr.rel (%p1274) target = $region68
      $region67: #{tpu_custom_call.1} parent=5 // pred_region
        %s1277 = ssub.s32 %s24, 2
        // Predicated region
        $region69: #{tpu_custom_call.1} parent=67 // pred_check
          %p1278 = pneg %p168
        $region70: #{tpu_custom_call.1} parent=67 // pred_check_branch
          %1280 = sbr.rel (%p1278) target = $region72
        $region71: #{tpu_custom_call.1} parent=67 // pred_region
          %s1281 = sand.u32 %s153, 1
          %s1282 = scalar_lea.sflag [#allocation4], %s1281
          %s1283 = sand.u32 %s153, 1
          %s1284 = smul.addr %s1283, 8
          %s1285 = scalar_lea.vmem [#allocation10], %s1284
          %1286 = dma.done %s1282, 128
        $region72: #{tpu_custom_call.1} parent=67 // pred_fallthru
          _
        // Predicated region
        $region73: #{tpu_custom_call.1} parent=67 // pred_check
          %p1287 = pneg %p194
        $region74: #{tpu_custom_call.1} parent=67 // pred_check_branch
          %1289 = sbr.rel (%p1287) target = $region76
        $region75: #{tpu_custom_call.1} parent=67 // pred_region
          %s1290 = sand.u32 %s179, 1
          %s1291 = scalar_lea.sflag [#allocation12], %s1290
          %s1292 = sand.u32 %s179, 1
          %s1293 = smul.addr %s1292, 32
          %s1294 = scalar_lea.vmem [#allocation11], %s1293
          %1295 = dma.done %s1291, 512
        $region76: #{tpu_custom_call.1} parent=67 // pred_fallthru
          _
      $region68: #{tpu_custom_call.1} parent=5 // pred_fallthru
        _
    $region6: #{tpu_custom_call.1} parent=1 // loop_footer
      %s28 = sadd.s32 1, %s24
    $region7: #{tpu_custom_call.1} parent=1 // loop_footer_branch
      %23 = sbr.rel target = $region3
    $region8: #{tpu_custom_call.1} parent=1 // loop_exit
      _
    %1296 = vsyncpa [#allocation3], 1
    %s1297 = scalar_lea.sflag [#allocation3], 1
    %1298 = vsyncpa %s1297, 1
    %1299 = vsyncpa [#allocation6], 1
    %1300 = vsyncpa [#allocation9], 1
    %1301 = vsyncpa [#allocation4], 1
    %s1302 = scalar_lea.sflag [#allocation4], 1
    %1303 = vsyncpa %s1302, 1
    %1304 = vsyncpa [#allocation12], 1
    %s1305 = scalar_lea.sflag [#allocation12], 1
    %1306 = vsyncpa %s1305, 1

</llo_original>
